<compile_context>
chip_gen: v6e
topology: v6e:2x2x1
jax: 0.10.0
libtpu: 0.0.40
codegen_flags: <defaults>
</compile_context>

<pallas_src>
import functools
import math

import jax
import jax.numpy as jnp
from jax.experimental import pallas as pl
from jax.experimental.pallas import tpu as pltpu  # noqa: F401  (TPU backend module)


def _attention_kernel(x_ref, wqkv_ref, bqkv_ref, wo_ref, bo_ref, o_ref, *,
                      num_heads, head_size, batch, seq):
    hidden = num_heads * head_size
    tokens = batch * seq

    x = x_ref[...]                                     # (B*S, H) f32

    # Fused Q|K|V projection: a single MXU pass over all tokens.
    # The attention scale 1/sqrt(head_size) is already folded into the Q columns.
    qkv = jnp.dot(x, wqkv_ref[...],
                  preferred_element_type=jnp.float32) + bqkv_ref[...]    # (B*S, 3H)

    # Split tokens back into (B, S, .). seq == 8 == sublane tile, so this reshape only
    # regroups whole sublane tiles (layout-trivial).
    qkv3 = qkv.reshape(batch, seq, 3 * hidden)         # (B, S, 3H)

    wo = wo_ref[...]                                   # (H, H)
    acc = jnp.zeros((tokens, hidden), jnp.float32)

    # Static loop over heads; each head's score/softmax/PV is batched over the batch dim.
    for h in range(num_heads):
        lo = h * head_size
        hi = lo + head_size
        qh = qkv3[:, :, lo:hi]                                  # (B, S, hd)
        kh = qkv3[:, :, hidden + lo:hidden + hi]                # (B, S, hd)
        vh = qkv3[:, :, 2 * hidden + lo:2 * hidden + hi]        # (B, S, hd)

        s = jnp.einsum('bqd,bkd->bqk', qh, kh,
                       preferred_element_type=jnp.float32)      # (B, S, S)
        s = s - jnp.max(s, axis=-1, keepdims=True)              # stable softmax(dim=-1)
        p = jnp.exp(s)
        p = p * pl.reciprocal(jnp.sum(p, axis=-1, keepdims=True), approx=True)
        ctx_h = jnp.einsum('bqk,bkd->bqd', p, vh,
                           preferred_element_type=jnp.float32)  # (B, S, hd)

        # out = sum_h ctx_h @ W_out[h*hd:(h+1)*hd, :]
        # Fuses the heads-merge with the output projection; W_out row slices are
        # sublane-tile aligned (head_size == 8), so no lane shuffles are needed.
        acc = acc + jnp.dot(ctx_h.reshape(tokens, head_size), wo[lo:hi, :],
                            preferred_element_type=jnp.float32)

    o_ref[...] = (acc + bo_ref[...]).astype(o_ref.dtype)


def attention_pallas(x, packed, *, num_heads):
    """x: (B, S, H) float32. packed: dict from pack_params (fused/pre-scaled weights)."""
    B, S, H = x.shape
    head_size = H // num_heads
    x2d = x.reshape(B * S, H)            # contiguous reshape, free in XLA

    kernel = functools.partial(_attention_kernel,
                               num_heads=num_heads, head_size=head_size,
                               batch=B, seq=S)

    out2d = pl.pallas_call(
        kernel,
        out_shape=jax.ShapeDtypeStruct((B * S, H), x.dtype),
        # No grid / BlockSpecs: full arrays (a few KiB total) are placed in VMEM for a
        # single kernel invocation -- the problem is far too small to tile.
    )(x2d, packed["w_qkv"], packed["b_qkv"], packed["w_out"], packed["b_out"])

    return out2d.reshape(B, S, H)


def pack_params(params, *, num_heads, hidden):
    """One-time parameter transform: fuse Q|K|V and fold in the attention scale."""
    head_size = hidden // num_heads
    scale = 1.0 / math.sqrt(head_size)
    w_qkv = jnp.concatenate(
        [params["wq"] * scale, params["wk"], params["wv"]], axis=1)      # (H, 3H)
    b_qkv = jnp.concatenate(
        [params["bq"] * scale, params["bk"], params["bv"]], axis=1)      # (1, 3H)
    return {"w_qkv": w_qkv, "b_qkv": b_qkv,
            "w_out": params["wo"], "b_out": params["bo"]}


def attention_reference(x, params, *, num_heads):
    """Plain-JAX mirror of the PyTorch forward (unfused params, explicit scale)."""
    B, S, H = x.shape
    hd = H // num_heads

    def lin(t, w, b):
        return t @ w + b

    q = lin(x, params["wq"], params["bq"])
    k = lin(x, params["wk"], params["bk"])
    v = lin(x, params["wv"], params["bv"])

    def split(t):  # (B,S,H) -> (B,nh,S,hd)
        return t.reshape(B, S, num_heads, hd).transpose(0, 2, 1, 3)

    q, k, v = split(q), split(k), split(v)
    qk = jnp.einsum("bhqd,bhkd->bhqk", q, k) / math.sqrt(hd)
    p = jax.nn.softmax(qk, axis=-1)
    ctx = jnp.einsum("bhqk,bhkd->bhqd", p, v)
    ctx = ctx.transpose(0, 2, 1, 3).reshape(B, S, H)
    return lin(ctx, params["wo"], params["bo"])


def init_params(key, hidden):
    ks = jax.random.split(key, 8)
    scale = 1.0 / math.sqrt(hidden)

    def w(k):  # stored as (in, out)
        return jax.random.uniform(k, (hidden, hidden), jnp.float32, -scale, scale)

    def b(k):
        return jax.random.uniform(k, (1, hidden), jnp.float32, -scale, scale)

    return {
        "wq": w(ks[0]), "bq": b(ks[1]),
        "wk": w(ks[2]), "bk": b(ks[3]),
        "wv": w(ks[4]), "bv": b(ks[5]),
        "wo": w(ks[6]), "bo": b(ks[7]),
    }


if __name__ == "__main__":
    # config.hidden_size=32, config.transformer__num_heads=4 (scaled-down config)
    B, S, HIDDEN, NUM_HEADS = 2, 8, 32, 4

    key = jax.random.PRNGKey(0)
    kx, kp = jax.random.split(key)
    x = jax.random.normal(kx, (B, S, HIDDEN), jnp.float32)
    params = init_params(kp, HIDDEN)
    packed = pack_params(params, num_heads=NUM_HEADS, hidden=HIDDEN)

    out = attention_pallas(x, packed, num_heads=NUM_HEADS)
    out = jax.block_until_ready(out)

    ref = attention_reference(x, params, num_heads=NUM_HEADS)
    assert out.shape == (B, S, HIDDEN)
    assert jnp.allclose(out, ref, atol=1e-3, rtol=1e-3), "mismatch vs reference"

    print("KERNEL_OK")
</pallas_src>

<mosaic_0001>
module attributes {stable_mosaic.version = 11 : i64} {
  func.func @_attention_kernel(%arg0: memref<16x32xf32, #tpu.memory_space<vmem>>, %arg1: memref<32x96xf32, #tpu.memory_space<vmem>>, %arg2: memref<1x96xf32, #tpu.memory_space<vmem>>, %arg3: memref<32x32xf32, #tpu.memory_space<vmem>>, %arg4: memref<1x32xf32, #tpu.memory_space<vmem>>, %arg5: memref<16x32xf32, #tpu.memory_space<vmem>>) attributes {dimension_semantics = [], scalar_prefetch = 0 : i64, scratch_operands = 0 : i64, tpu.core_type = #tpu.core_type<tc>} {
    %c0 = arith.constant 0 : index
    %c0_0 = arith.constant 0 : index
    %0 = vector.load %arg0[%c0, %c0_0] : memref<16x32xf32, #tpu.memory_space<vmem>>, vector<16x32xf32>
    %c0_1 = arith.constant 0 : index
    %c0_2 = arith.constant 0 : index
    %1 = vector.load %arg1[%c0_1, %c0_2] : memref<32x96xf32, #tpu.memory_space<vmem>>, vector<32x96xf32>
    %cst = arith.constant dense<0.000000e+00> : vector<16x96xf32>
    %2 = tpu.matmul %0, %1, %cst {dimension_numbers = #tpu.dot_dimension_numbers<[1], [0], [0], [1], [0, 0, 1, 1], [], []>} : vector<16x32xf32>, vector<32x96xf32>, vector<16x96xf32> -> vector<16x96xf32>
    %c0_3 = arith.constant 0 : index
    %c0_4 = arith.constant 0 : index
    %3 = vector.load %arg2[%c0_3, %c0_4] : memref<1x96xf32, #tpu.memory_space<vmem>>, vector<1x96xf32>
    %4 = vector.broadcast %3 : vector<1x96xf32> to vector<16x96xf32>
    %5 = arith.addf %2, %4 : vector<16x96xf32>
    %6 = vector.shape_cast %5 : vector<16x96xf32> to vector<2x8x96xf32>
    %c0_5 = arith.constant 0 : index
    %c0_6 = arith.constant 0 : index
    %7 = vector.load %arg3[%c0_5, %c0_6] : memref<32x32xf32, #tpu.memory_space<vmem>>, vector<32x32xf32>
    %cst_7 = arith.constant 0.000000e+00 : f32
    %8 = vector.broadcast %cst_7 : f32 to vector<16x32xf32>
    %9 = vector.extract_strided_slice %6 {offsets = [0, 0, 0], sizes = [2, 8, 8], strides = [1, 1, 1]} : vector<2x8x96xf32> to vector<2x8x8xf32>
    %10 = vector.extract_strided_slice %6 {offsets = [0, 0, 32], sizes = [2, 8, 8], strides = [1, 1, 1]} : vector<2x8x96xf32> to vector<2x8x8xf32>
    %11 = vector.extract_strided_slice %6 {offsets = [0, 0, 64], sizes = [2, 8, 8], strides = [1, 1, 1]} : vector<2x8x96xf32> to vector<2x8x8xf32>
    "tpu.trace_start"() <{level = 10 : i32, message = "bqd,bkd->bqk"}> : () -> ()
    %cst_8 = arith.constant dense<0.000000e+00> : vector<2x8x8xf32>
    %12 = tpu.matmul %9, %10, %cst_8 {dimension_numbers = #tpu.dot_dimension_numbers<[2], [2], [1], [1], [0, 0, 0, 1, 1, 1], [0], [0]>} : vector<2x8x8xf32>, vector<2x8x8xf32>, vector<2x8x8xf32> -> vector<2x8x8xf32>
    "tpu.trace_stop"() : () -> ()
    %cst_9 = arith.constant dense<0xFF800000> : vector<2x8xf32>
    %13 = vector.multi_reduction <maximumf>, %12, %cst_9 [2] : vector<2x8x8xf32> to vector<2x8xf32>
    %14 = vector.shape_cast %13 : vector<2x8xf32> to vector<2x8x1xf32>
    %15 = vector.broadcast %14 : vector<2x8x1xf32> to vector<2x8x8xf32>
    %16 = arith.subf %12, %15 : vector<2x8x8xf32>
    %17 = math.exp %16 : vector<2x8x8xf32>
    %cst_10 = arith.constant dense<0.000000e+00> : vector<2x8xf32>
    %18 = vector.multi_reduction <add>, %17, %cst_10 [2] : vector<2x8x8xf32> to vector<2x8xf32>
    %19 = vector.shape_cast %18 : vector<2x8xf32> to vector<2x8x1xf32>
    %20 = tpu.reciprocal %19 {approx = true} : vector<2x8x1xf32> -> vector<2x8x1xf32>
    %21 = vector.broadcast %20 : vector<2x8x1xf32> to vector<2x8x8xf32>
    %22 = arith.mulf %17, %21 : vector<2x8x8xf32>
    "tpu.trace_start"() <{level = 10 : i32, message = "bqk,bkd->bqd"}> : () -> ()
    %cst_11 = arith.constant dense<0.000000e+00> : vector<2x8x8xf32>
    %23 = tpu.matmul %22, %11, %cst_11 {dimension_numbers = #tpu.dot_dimension_numbers<[2], [1], [1], [2], [0, 0, 0, 1, 1, 2], [0], [0]>} : vector<2x8x8xf32>, vector<2x8x8xf32>, vector<2x8x8xf32> -> vector<2x8x8xf32>
    "tpu.trace_stop"() : () -> ()
    %24 = vector.shape_cast %23 : vector<2x8x8xf32> to vector<16x8xf32>
    %25 = vector.extract_strided_slice %7 {offsets = [0, 0], sizes = [8, 32], strides = [1, 1]} : vector<32x32xf32> to vector<8x32xf32>
    %cst_12 = arith.constant dense<0.000000e+00> : vector<16x32xf32>
    %26 = tpu.matmul %24, %25, %cst_12 {dimension_numbers = #tpu.dot_dimension_numbers<[1], [0], [0], [1], [0, 0, 1, 1], [], []>} : vector<16x8xf32>, vector<8x32xf32>, vector<16x32xf32> -> vector<16x32xf32>
    %27 = arith.addf %8, %26 : vector<16x32xf32>
    %28 = vector.extract_strided_slice %6 {offsets = [0, 0, 8], sizes = [2, 8, 8], strides = [1, 1, 1]} : vector<2x8x96xf32> to vector<2x8x8xf32>
    %29 = vector.extract_strided_slice %6 {offsets = [0, 0, 40], sizes = [2, 8, 8], strides = [1, 1, 1]} : vector<2x8x96xf32> to vector<2x8x8xf32>
    %30 = vector.extract_strided_slice %6 {offsets = [0, 0, 72], sizes = [2, 8, 8], strides = [1, 1, 1]} : vector<2x8x96xf32> to vector<2x8x8xf32>
    "tpu.trace_start"() <{level = 10 : i32, message = "bqd,bkd->bqk"}> : () -> ()
    %cst_13 = arith.constant dense<0.000000e+00> : vector<2x8x8xf32>
    %31 = tpu.matmul %28, %29, %cst_13 {dimension_numbers = #tpu.dot_dimension_numbers<[2], [2], [1], [1], [0, 0, 0, 1, 1, 1], [0], [0]>} : vector<2x8x8xf32>, vector<2x8x8xf32>, vector<2x8x8xf32> -> vector<2x8x8xf32>
    "tpu.trace_stop"() : () -> ()
    %cst_14 = arith.constant dense<0xFF800000> : vector<2x8xf32>
    %32 = vector.multi_reduction <maximumf>, %31, %cst_14 [2] : vector<2x8x8xf32> to vector<2x8xf32>
    %33 = vector.shape_cast %32 : vector<2x8xf32> to vector<2x8x1xf32>
    %34 = vector.broadcast %33 : vector<2x8x1xf32> to vector<2x8x8xf32>
    %35 = arith.subf %31, %34 : vector<2x8x8xf32>
    %36 = math.exp %35 : vector<2x8x8xf32>
    %cst_15 = arith.constant dense<0.000000e+00> : vector<2x8xf32>
    %37 = vector.multi_reduction <add>, %36, %cst_15 [2] : vector<2x8x8xf32> to vector<2x8xf32>
    %38 = vector.shape_cast %37 : vector<2x8xf32> to vector<2x8x1xf32>
    %39 = tpu.reciprocal %38 {approx = true} : vector<2x8x1xf32> -> vector<2x8x1xf32>
    %40 = vector.broadcast %39 : vector<2x8x1xf32> to vector<2x8x8xf32>
    %41 = arith.mulf %36, %40 : vector<2x8x8xf32>
    "tpu.trace_start"() <{level = 10 : i32, message = "bqk,bkd->bqd"}> : () -> ()
    %cst_16 = arith.constant dense<0.000000e+00> : vector<2x8x8xf32>
    %42 = tpu.matmul %41, %30, %cst_16 {dimension_numbers = #tpu.dot_dimension_numbers<[2], [1], [1], [2], [0, 0, 0, 1, 1, 2], [0], [0]>} : vector<2x8x8xf32>, vector<2x8x8xf32>, vector<2x8x8xf32> -> vector<2x8x8xf32>
    "tpu.trace_stop"() : () -> ()
    %43 = vector.shape_cast %42 : vector<2x8x8xf32> to vector<16x8xf32>
    %44 = vector.extract_strided_slice %7 {offsets = [8, 0], sizes = [8, 32], strides = [1, 1]} : vector<32x32xf32> to vector<8x32xf32>
    %cst_17 = arith.constant dense<0.000000e+00> : vector<16x32xf32>
    %45 = tpu.matmul %43, %44, %cst_17 {dimension_numbers = #tpu.dot_dimension_numbers<[1], [0], [0], [1], [0, 0, 1, 1], [], []>} : vector<16x8xf32>, vector<8x32xf32>, vector<16x32xf32> -> vector<16x32xf32>
    %46 = arith.addf %27, %45 : vector<16x32xf32>
    %47 = vector.extract_strided_slice %6 {offsets = [0, 0, 16], sizes = [2, 8, 8], strides = [1, 1, 1]} : vector<2x8x96xf32> to vector<2x8x8xf32>
    %48 = vector.extract_strided_slice %6 {offsets = [0, 0, 48], sizes = [2, 8, 8], strides = [1, 1, 1]} : vector<2x8x96xf32> to vector<2x8x8xf32>
    %49 = vector.extract_strided_slice %6 {offsets = [0, 0, 80], sizes = [2, 8, 8], strides = [1, 1, 1]} : vector<2x8x96xf32> to vector<2x8x8xf32>
    "tpu.trace_start"() <{level = 10 : i32, message = "bqd,bkd->bqk"}> : () -> ()
    %cst_18 = arith.constant dense<0.000000e+00> : vector<2x8x8xf32>
    %50 = tpu.matmul %47, %48, %cst_18 {dimension_numbers = #tpu.dot_dimension_numbers<[2], [2], [1], [1], [0, 0, 0, 1, 1, 1], [0], [0]>} : vector<2x8x8xf32>, vector<2x8x8xf32>, vector<2x8x8xf32> -> vector<2x8x8xf32>
    "tpu.trace_stop"() : () -> ()
    %cst_19 = arith.constant dense<0xFF800000> : vector<2x8xf32>
    %51 = vector.multi_reduction <maximumf>, %50, %cst_19 [2] : vector<2x8x8xf32> to vector<2x8xf32>
    %52 = vector.shape_cast %51 : vector<2x8xf32> to vector<2x8x1xf32>
    %53 = vector.broadcast %52 : vector<2x8x1xf32> to vector<2x8x8xf32>
    %54 = arith.subf %50, %53 : vector<2x8x8xf32>
    %55 = math.exp %54 : vector<2x8x8xf32>
    %cst_20 = arith.constant dense<0.000000e+00> : vector<2x8xf32>
    %56 = vector.multi_reduction <add>, %55, %cst_20 [2] : vector<2x8x8xf32> to vector<2x8xf32>
    %57 = vector.shape_cast %56 : vector<2x8xf32> to vector<2x8x1xf32>
    %58 = tpu.reciprocal %57 {approx = true} : vector<2x8x1xf32> -> vector<2x8x1xf32>
    %59 = vector.broadcast %58 : vector<2x8x1xf32> to vector<2x8x8xf32>
    %60 = arith.mulf %55, %59 : vector<2x8x8xf32>
    "tpu.trace_start"() <{level = 10 : i32, message = "bqk,bkd->bqd"}> : () -> ()
    %cst_21 = arith.constant dense<0.000000e+00> : vector<2x8x8xf32>
    %61 = tpu.matmul %60, %49, %cst_21 {dimension_numbers = #tpu.dot_dimension_numbers<[2], [1], [1], [2], [0, 0, 0, 1, 1, 2], [0], [0]>} : vector<2x8x8xf32>, vector<2x8x8xf32>, vector<2x8x8xf32> -> vector<2x8x8xf32>
    "tpu.trace_stop"() : () -> ()
    %62 = vector.shape_cast %61 : vector<2x8x8xf32> to vector<16x8xf32>
    %63 = vector.extract_strided_slice %7 {offsets = [16, 0], sizes = [8, 32], strides = [1, 1]} : vector<32x32xf32> to vector<8x32xf32>
    %cst_22 = arith.constant dense<0.000000e+00> : vector<16x32xf32>
    %64 = tpu.matmul %62, %63, %cst_22 {dimension_numbers = #tpu.dot_dimension_numbers<[1], [0], [0], [1], [0, 0, 1, 1], [], []>} : vector<16x8xf32>, vector<8x32xf32>, vector<16x32xf32> -> vector<16x32xf32>
    %65 = arith.addf %46, %64 : vector<16x32xf32>
    %66 = vector.extract_strided_slice %6 {offsets = [0, 0, 24], sizes = [2, 8, 8], strides = [1, 1, 1]} : vector<2x8x96xf32> to vector<2x8x8xf32>
    %67 = vector.extract_strided_slice %6 {offsets = [0, 0, 56], sizes = [2, 8, 8], strides = [1, 1, 1]} : vector<2x8x96xf32> to vector<2x8x8xf32>
    %68 = vector.extract_strided_slice %6 {offsets = [0, 0, 88], sizes = [2, 8, 8], strides = [1, 1, 1]} : vector<2x8x96xf32> to vector<2x8x8xf32>
    "tpu.trace_start"() <{level = 10 : i32, message = "bqd,bkd->bqk"}> : () -> ()
    %cst_23 = arith.constant dense<0.000000e+00> : vector<2x8x8xf32>
    %69 = tpu.matmul %66, %67, %cst_23 {dimension_numbers = #tpu.dot_dimension_numbers<[2], [2], [1], [1], [0, 0, 0, 1, 1, 1], [0], [0]>} : vector<2x8x8xf32>, vector<2x8x8xf32>, vector<2x8x8xf32> -> vector<2x8x8xf32>
    "tpu.trace_stop"() : () -> ()
    %cst_24 = arith.constant dense<0xFF800000> : vector<2x8xf32>
    %70 = vector.multi_reduction <maximumf>, %69, %cst_24 [2] : vector<2x8x8xf32> to vector<2x8xf32>
    %71 = vector.shape_cast %70 : vector<2x8xf32> to vector<2x8x1xf32>
    %72 = vector.broadcast %71 : vector<2x8x1xf32> to vector<2x8x8xf32>
    %73 = arith.subf %69, %72 : vector<2x8x8xf32>
    %74 = math.exp %73 : vector<2x8x8xf32>
    %cst_25 = arith.constant dense<0.000000e+00> : vector<2x8xf32>
    %75 = vector.multi_reduction <add>, %74, %cst_25 [2] : vector<2x8x8xf32> to vector<2x8xf32>
    %76 = vector.shape_cast %75 : vector<2x8xf32> to vector<2x8x1xf32>
    %77 = tpu.reciprocal %76 {approx = true} : vector<2x8x1xf32> -> vector<2x8x1xf32>
    %78 = vector.broadcast %77 : vector<2x8x1xf32> to vector<2x8x8xf32>
    %79 = arith.mulf %74, %78 : vector<2x8x8xf32>
    "tpu.trace_start"() <{level = 10 : i32, message = "bqk,bkd->bqd"}> : () -> ()
    %cst_26 = arith.constant dense<0.000000e+00> : vector<2x8x8xf32>
    %80 = tpu.matmul %79, %68, %cst_26 {dimension_numbers = #tpu.dot_dimension_numbers<[2], [1], [1], [2], [0, 0, 0, 1, 1, 2], [0], [0]>} : vector<2x8x8xf32>, vector<2x8x8xf32>, vector<2x8x8xf32> -> vector<2x8x8xf32>
    "tpu.trace_stop"() : () -> ()
    %81 = vector.shape_cast %80 : vector<2x8x8xf32> to vector<16x8xf32>
    %82 = vector.extract_strided_slice %7 {offsets = [24, 0], sizes = [8, 32], strides = [1, 1]} : vector<32x32xf32> to vector<8x32xf32>
    %cst_27 = arith.constant dense<0.000000e+00> : vector<16x32xf32>
    %83 = tpu.matmul %81, %82, %cst_27 {dimension_numbers = #tpu.dot_dimension_numbers<[1], [0], [0], [1], [0, 0, 1, 1], [], []>} : vector<16x8xf32>, vector<8x32xf32>, vector<16x32xf32> -> vector<16x32xf32>
    %84 = arith.addf %65, %83 : vector<16x32xf32>
    %c0_28 = arith.constant 0 : index
    %c0_29 = arith.constant 0 : index
    %85 = vector.load %arg4[%c0_28, %c0_29] : memref<1x32xf32, #tpu.memory_space<vmem>>, vector<1x32xf32>
    %86 = vector.broadcast %85 : vector<1x32xf32> to vector<16x32xf32>
    %87 = arith.addf %84, %86 : vector<16x32xf32>
    %c0_30 = arith.constant 0 : index
    %c0_31 = arith.constant 0 : index
    %88 = vector.load %arg5[%c0_30, %c0_31] : memref<16x32xf32, #tpu.memory_space<vmem>>, vector<16x32xf32>
    tpu.vector_store %arg5[%c0_30, %c0_31], %87 {strides = array<i32>} : memref<16x32xf32, #tpu.memory_space<vmem>>, vector<16x32xf32>,
    return
  }
}

</mosaic_0001>

<llo_original>
// kernel: tpu_custom_call.1
$region0: #{tpu_custom_call.1}
  #allocation0 [shape = 'u32[]', space=smem, size = 0x4, offset = 0x4, fixed_abs, tag = 'smem constant byte address 0x4 - core index']
  #allocation1 [shape = 'u32[144,128]{1,0:T(1,128)}', space=vmem, size = 0x12000, scoped, tag = 'internal scratch']
  %s0 = inlined_call_operand.hbm [shape: f32[16,32], index: 0, kind: input, shape index: {}]
  %s1 = inlined_call_operand.hbm [shape: f32[32,96], index: 1, kind: input, shape index: {}]
  %s2 = inlined_call_operand.vmem [shape: f32[1,96], index: 2, kind: input, shape index: {}]
  %s3 = inlined_call_operand.hbm [shape: f32[32,32], index: 3, kind: input, shape index: {}]
  %s4 = inlined_call_operand.vmem [shape: f32[1,32], index: 4, kind: input, shape index: {}]
  %s5 = inlined_call_operand.hbm [shape: f32[16,32], index: 5, kind: output, shape index: {}]
  %s6 = sld [smem:[#allocation0]]
  $region42: #{tpu_custom_call.1} parent=0
    _
  %s8 = ssub.s32 1, %s6
  %s9 = scalar_select 0, %s8, %s6
  $region1: #{tpu_custom_call.1} parent=0
    #allocation2 [shape = 'u8[8192]{0}', space=vmem, size = 0x2000, scoped, tag = 'input window, operand 0, single buffered']
    #allocation3 [shape = 's32[1]{0}', space=sflag, size = 0x4, scoped, tag = 'scoped memory for tpu_custom_call.1']
    #allocation4 [shape = 's32[1]{0}', space=sflag, size = 0x4, scoped, tag = 'scoped memory for tpu_custom_call.1']
    #allocation5 [shape = 'u8[16384]{0}', space=vmem, size = 0x4000, scoped, tag = 'input window, operand 1, single buffered']
    #allocation6 [shape = 's32[1]{0}', space=sflag, size = 0x4, scoped, tag = 'scoped memory for tpu_custom_call.1']
    #allocation7 [shape = 'u8[16384]{0}', space=vmem, size = 0x4000, scoped, tag = 'input window, operand 3, single buffered']
    #allocation8 [shape = 'u8[8192]{0}', space=vmem, size = 0x2000, scoped, tag = 'output window, operand 0, single buffered']
    %10 = vsyncpa [#allocation3], 0
    %11 = vsyncpa [#allocation6], 0
    %12 = vsyncpa [#allocation4], 0
    // Predicated region
    $region2: #{tpu_custom_call.1} parent=1 // pred_check
      _
    $region3: #{tpu_custom_call.1} parent=1 // pred_check_branch
      %14 = sbr.rel (0) target = $region5
    $region4: #{tpu_custom_call.1} parent=1 // pred_region
      %s16 = ssub.s32 256, 256
      %17 = vsyncadd [#allocation3], %s16
      %s18 = sshll.u32 [#allocation2], 4
      %s19 = int_to_ptr.vmem [resolvable:$true] %s18
      %24 = dma.hbm_to_vmem [thread:$0]  %s0, 256, %s19, [#allocation3], 128, 128, 8
    $region5: #{tpu_custom_call.1} parent=1 // pred_fallthru
      _
    // Predicated region
    $region6: #{tpu_custom_call.1} parent=1 // pred_check
      _
    $region7: #{tpu_custom_call.1} parent=1 // pred_check_branch
      %26 = sbr.rel (0) target = $region9
    $region8: #{tpu_custom_call.1} parent=1 // pred_region
      %s28 = ssub.s32 512, 512
      %29 = vsyncadd [#allocation6], %s28
      %s30 = sshll.u32 [#allocation5], 4
      %s31 = int_to_ptr.vmem [resolvable:$true] %s30
      %36 = dma.hbm_to_vmem [thread:$0]  %s1, 512, %s31, [#allocation6], 128, 128, 8
    $region9: #{tpu_custom_call.1} parent=1 // pred_fallthru
      _
    // Predicated region
    $region10: #{tpu_custom_call.1} parent=1 // pred_check
      _
    $region11: #{tpu_custom_call.1} parent=1 // pred_check_branch
      %38 = sbr.rel (0) target = $region13
    $region12: #{tpu_custom_call.1} parent=1 // pred_region
      _
    $region13: #{tpu_custom_call.1} parent=1 // pred_fallthru
      _
    // Predicated region
    $region14: #{tpu_custom_call.1} parent=1 // pred_check
      _
    $region15: #{tpu_custom_call.1} parent=1 // pred_check_branch
      %40 = sbr.rel (0) target = $region17
    $region16: #{tpu_custom_call.1} parent=1 // pred_region
      %s42 = ssub.s32 512, 512
      %43 = vsyncadd [#allocation6], %s42
      %s44 = sshll.u32 [#allocation7], 4
      %s45 = int_to_ptr.vmem [resolvable:$true] %s44
      %50 = dma.hbm_to_vmem [thread:$0]  %s3, 512, %s45, [#allocation6], 128, 128, 8
    $region17: #{tpu_custom_call.1} parent=1 // pred_fallthru
      _
    // Predicated region
    $region18: #{tpu_custom_call.1} parent=1 // pred_check
      _
    $region19: #{tpu_custom_call.1} parent=1 // pred_check_branch
      %52 = sbr.rel (0) target = $region21
    $region20: #{tpu_custom_call.1} parent=1 // pred_region
      _
    $region21: #{tpu_custom_call.1} parent=1 // pred_fallthru
      _
    // Predicated region
    $region22: #{tpu_custom_call.1} parent=1 // pred_check
      _
    $region23: #{tpu_custom_call.1} parent=1 // pred_check_branch
      %54 = sbr.rel (0) target = $region25
    $region24: #{tpu_custom_call.1} parent=1 // pred_region
      %55 = dma.done [#allocation3], 256
    $region25: #{tpu_custom_call.1} parent=1 // pred_fallthru
      _
    // Predicated region
    $region26: #{tpu_custom_call.1} parent=1 // pred_check
      _
    $region27: #{tpu_custom_call.1} parent=1 // pred_check_branch
      %57 = sbr.rel (0) target = $region29
    $region28: #{tpu_custom_call.1} parent=1 // pred_region
      %58 = dma.done [#allocation6], 512
    $region29: #{tpu_custom_call.1} parent=1 // pred_fallthru
      _
    // Predicated region
    $region30: #{tpu_custom_call.1} parent=1 // pred_check
      _
    $region31: #{tpu_custom_call.1} parent=1 // pred_check_branch
      %60 = sbr.rel (0) target = $region33
    $region32: #{tpu_custom_call.1} parent=1 // pred_region
      %61 = dma.done [#allocation6], 512
    $region33: #{tpu_custom_call.1} parent=1 // pred_fallthru
      _
    %v62 = vld [vmem:[#allocation2] sm:$0xff]
    %v63 = vld [vmem:[#allocation2 + $0x8] sm:$0xff]
    %v64 = vld [vmem:[#allocation5] sm:$0xff]
    %v65 = vld [vmem:[#allocation5 + $0x8] sm:$0xff]
    %v66 = vld [vmem:[#allocation5 + $0x10] sm:$0xff]
    %v67 = vld [vmem:[#allocation5 + $0x18] sm:$0xff]
    %v68 = vld [vmem:[%s2] sm:$0x1]
    %v70 = vlaneseq
    %v71 = vshrl.u32 %v70, 7
    %v72 = vsub.s32 0, %v71
    %v73 = vrot.slane %v68, %v72
    %vm75 = vcmask 261120
    %v77 = vsel %vm75, %v62, 0
    %v80 = vsel %vm75, %v63, 0
    %82 = vmatprep.subr.mxu0 0.0
    %83 = vmatpush1.msra.mxu0 0.0
    %84 = vmatprep.subr.mxu0 0.0
    %85 = vmatpush1.msra.mxu0 0.0
    %86 = vmatprep.subr.mxu0 0.0
    %87 = vmatpush1.msra.mxu0 0.0
    %88 = vmatprep.subr.mxu0 0.0
    %89 = vmatpush1.msra.mxu0 0.0
    %90 = vmatprep.subr.mxu0 0.0
    %91 = vmatpush1.msra.mxu0 0.0
    %92 = vmatprep.subr.mxu0 0.0
    %93 = vmatpush1.msra.mxu0 0.0
    %94 = vmatprep.subr.mxu0 0.0
    %95 = vmatpush1.msra.mxu0 0.0
    %96 = vmatprep.subr.mxu0 0.0
    %97 = vmatpush1.msra.mxu0 0.0
    %98 = vmatprep.subr.mxu0 0.0
    %99 = vmatpush1.msra.mxu0 0.0
    %100 = vmatprep.subr.mxu0 0.0
    %101 = vmatpush1.msra.mxu0 0.0
    %102 = vmatprep.subr.mxu0 0.0
    %103 = vmatpush1.msra.mxu0 0.0
    %104 = vmatprep.subr.mxu0 0.0
    %105 = vmatpush1.msra.mxu0 0.0
    %106 = vmatprep.subr.mxu0 0.0
    %107 = vmatpush1.msra.mxu0 %v67
    %108 = vmatprep.subr.mxu0 0.0
    %109 = vmatpush1.msra.mxu0 %v66
    %110 = vmatprep.subr.mxu0 0.0
    %111 = vmatpush1.msra.mxu0 %v65
    %112 = vmatprep.subr.mxu0 0.0
    %113 = vmatpush1.msra.mxu0 %v64
    %114 = vmatprep.subr.mxu0 0.0
    %115 = vmatpush2.msra.mxu0 0.0
    %116 = vmatprep.subr.mxu0 0.0
    %117 = vmatpush2.msra.mxu0 0.0
    %118 = vmatprep.subr.mxu0 0.0
    %119 = vmatpush2.msra.mxu0 0.0
    %120 = vmatprep.subr.mxu0 0.0
    %121 = vmatpush2.msra.mxu0 0.0
    %122 = vmatprep.subr.mxu0 0.0
    %123 = vmatpush2.msra.mxu0 0.0
    %124 = vmatprep.subr.mxu0 0.0
    %125 = vmatpush2.msra.mxu0 0.0
    %126 = vmatprep.subr.mxu0 0.0
    %127 = vmatpush2.msra.mxu0 0.0
    %128 = vmatprep.subr.mxu0 0.0
    %129 = vmatpush2.msra.mxu0 0.0
    %130 = vmatprep.subr.mxu0 0.0
    %131 = vmatpush2.msra.mxu0 0.0
    %132 = vmatprep.subr.mxu0 0.0
    %133 = vmatpush2.msra.mxu0 0.0
    %134 = vmatprep.subr.mxu0 0.0
    %135 = vmatpush2.msra.mxu0 0.0
    %136 = vmatprep.subr.mxu0 0.0
    %137 = vmatpush2.msra.mxu0 0.0
    %138 = vmatprep.subr.mxu0 0.0
    %139 = vmatpush2.msra.mxu0 0.0
    %140 = vmatprep.subr.mxu0 0.0
    %141 = vmatpush2.msra.mxu0 0.0
    %142 = vmatprep.subr.mxu0 0.0
    %143 = vmatpush2.msra.mxu0 0.0
    %144 = vmatprep.subr.mxu0 0.0
    %145 = vmatpush2.msra.mxu0 0.0
    %146 = vmatprep.mubr.f32.mxu0 0.0
    %147 = vmatmul.mubr.f32.gmra.mxu0 %v77
    %v148 = vpop.f32.mrf.mxu0
    %v149 = vadd.f32 %v73, %v148
    %v150 = vpop.f32.mrf.mxu0
    %151 = vmatprep.mubr.f32.mxu0 0.0
    %152 = vmatmul.mubr.f32.gmra.mxu0 %v80
    %v153 = vpop.f32.mrf.mxu0
    %v154 = vadd.f32 %v73, %v153
    %v155 = vpop.f32.mrf.mxu0
    %156 = vdwg.mxu0
    %v157 = vld [vmem:[#allocation7] sm:$0xff]
    %v158 = vld [vmem:[#allocation7 + $0x8] sm:$0xff]
    %v159 = vld [vmem:[#allocation7 + $0x10] sm:$0xff]
    %v160 = vld [vmem:[#allocation7 + $0x18] sm:$0xff]
    %162 = vrot.lane.b32.xlu0 %v149, 96
    %v163 = vpop.permute.xlu0 %162
    %vm164 = vcmask 64512
    %v165 = vsel %vm164, %v149, 0
    %v167 = vsel %vm164, %v163, 0
    %169 = vmatprep.subr.mxu0 0.0
    %170 = vmatpush1.xpose.msra.mxu0 0.0
    %171 = vmatprep.subr.mxu0 0.0
    %172 = vmatpush1.xpose.msra.mxu0 0.0
    %173 = vmatprep.subr.mxu0 0.0
    %174 = vmatpush1.xpose.msra.mxu0 0.0
    %175 = vmatprep.subr.mxu0 0.0
    %176 = vmatpush1.xpose.msra.mxu0 0.0
    %177 = vmatprep.subr.mxu0 0.0
    %178 = vmatpush1.xpose.msra.mxu0 0.0
    %179 = vmatprep.subr.mxu0 0.0
    %180 = vmatpush1.xpose.msra.mxu0 0.0
    %181 = vmatprep.subr.mxu0 0.0
    %182 = vmatpush1.xpose.msra.mxu0 0.0
    %183 = vmatprep.subr.mxu0 0.0
    %184 = vmatpush1.xpose.msra.mxu0 0.0
    %185 = vmatprep.subr.mxu0 0.0
    %186 = vmatpush1.xpose.msra.mxu0 0.0
    %187 = vmatprep.subr.mxu0 0.0
    %188 = vmatpush1.xpose.msra.mxu0 0.0
    %189 = vmatprep.subr.mxu0 0.0
    %190 = vmatpush1.xpose.msra.mxu0 0.0
    %191 = vmatprep.subr.mxu0 0.0
    %192 = vmatpush1.xpose.msra.mxu0 0.0
    %193 = vmatprep.subr.mxu0 0.0
    %194 = vmatpush1.xpose.msra.mxu0 0.0
    %195 = vmatprep.subr.mxu0 0.0
    %196 = vmatpush1.xpose.msra.mxu0 0.0
    %197 = vmatprep.subr.mxu0 0.0
    %198 = vmatpush1.xpose.msra.mxu0 0.0
    %199 = vmatprep.subr.mxu0 0.0
    %200 = vmatpush1.xpose.msra.mxu0 %v167
    %201 = vmatprep.subr.mxu0 0.0
    %202 = vmatpush2.xpose.msra.mxu0 0.0
    %203 = vmatprep.subr.mxu0 0.0
    %204 = vmatpush2.xpose.msra.mxu0 0.0
    %205 = vmatprep.subr.mxu0 0.0
    %206 = vmatpush2.xpose.msra.mxu0 0.0
    %207 = vmatprep.subr.mxu0 0.0
    %208 = vmatpush2.xpose.msra.mxu0 0.0
    %209 = vmatprep.subr.mxu0 0.0
    %210 = vmatpush2.xpose.msra.mxu0 0.0
    %211 = vmatprep.subr.mxu0 0.0
    %212 = vmatpush2.xpose.msra.mxu0 0.0
    %213 = vmatprep.subr.mxu0 0.0
    %214 = vmatpush2.xpose.msra.mxu0 0.0
    %215 = vmatprep.subr.mxu0 0.0
    %216 = vmatpush2.xpose.msra.mxu0 0.0
    %217 = vmatprep.subr.mxu0 0.0
    %218 = vmatpush2.xpose.msra.mxu0 0.0
    %219 = vmatprep.subr.mxu0 0.0
    %220 = vmatpush2.xpose.msra.mxu0 0.0
    %221 = vmatprep.subr.mxu0 0.0
    %222 = vmatpush2.xpose.msra.mxu0 0.0
    %223 = vmatprep.subr.mxu0 0.0
    %224 = vmatpush2.xpose.msra.mxu0 0.0
    %225 = vmatprep.subr.mxu0 0.0
    %226 = vmatpush2.xpose.msra.mxu0 0.0
    %227 = vmatprep.subr.mxu0 0.0
    %228 = vmatpush2.xpose.msra.mxu0 0.0
    %229 = vmatprep.subr.mxu0 0.0
    %230 = vmatpush2.xpose.msra.mxu0 0.0
    %231 = vmatprep.subr.mxu0 0.0
    %232 = vmatpush2.xpose.msra.mxu0 0.0
    %233 = vmatprep.mubr.f32.mxu0 0.0
    %234 = vmatmul.mubr.f32.gmra.mxu0 %v165
    %v235 = vpop.f32.mrf.mxu0
    %v236 = vadd.f32 0.0, %v235
    %v237 = vpop.f32.mrf.mxu0
    %238 = vdwg.mxu0
    %240 = vrot.lane.b32.xlu0 %v154, 96
    %v241 = vpop.permute.xlu0 %240
    %v242 = vsel %vm164, %v154, 0
    %v244 = vsel %vm164, %v241, 0
    %246 = vmatprep.subr.mxu0 0.0
    %247 = vmatpush1.xpose.msra.mxu0 0.0
    %248 = vmatprep.subr.mxu0 0.0
    %249 = vmatpush1.xpose.msra.mxu0 0.0
    %250 = vmatprep.subr.mxu0 0.0
    %251 = vmatpush1.xpose.msra.mxu0 0.0
    %252 = vmatprep.subr.mxu0 0.0
    %253 = vmatpush1.xpose.msra.mxu0 0.0
    %254 = vmatprep.subr.mxu0 0.0
    %255 = vmatpush1.xpose.msra.mxu0 0.0
    %256 = vmatprep.subr.mxu0 0.0
    %257 = vmatpush1.xpose.msra.mxu0 0.0
    %258 = vmatprep.subr.mxu0 0.0
    %259 = vmatpush1.xpose.msra.mxu0 0.0
    %260 = vmatprep.subr.mxu0 0.0
    %261 = vmatpush1.xpose.msra.mxu0 0.0
    %262 = vmatprep.subr.mxu0 0.0
    %263 = vmatpush1.xpose.msra.mxu0 0.0
    %264 = vmatprep.subr.mxu0 0.0
    %265 = vmatpush1.xpose.msra.mxu0 0.0
    %266 = vmatprep.subr.mxu0 0.0
    %267 = vmatpush1.xpose.msra.mxu0 0.0
    %268 = vmatprep.subr.mxu0 0.0
    %269 = vmatpush1.xpose.msra.mxu0 0.0
    %270 = vmatprep.subr.mxu0 0.0
    %271 = vmatpush1.xpose.msra.mxu0 0.0
    %272 = vmatprep.subr.mxu0 0.0
    %273 = vmatpush1.xpose.msra.mxu0 0.0
    %274 = vmatprep.subr.mxu0 0.0
    %275 = vmatpush1.xpose.msra.mxu0 0.0
    %276 = vmatprep.subr.mxu0 0.0
    %277 = vmatpush1.xpose.msra.mxu0 %v244
    %278 = vmatprep.subr.mxu0 0.0
    %279 = vmatpush2.xpose.msra.mxu0 0.0
    %280 = vmatprep.subr.mxu0 0.0
    %281 = vmatpush2.xpose.msra.mxu0 0.0
    %282 = vmatprep.subr.mxu0 0.0
    %283 = vmatpush2.xpose.msra.mxu0 0.0
    %284 = vmatprep.subr.mxu0 0.0
    %285 = vmatpush2.xpose.msra.mxu0 0.0
    %286 = vmatprep.subr.mxu0 0.0
    %287 = vmatpush2.xpose.msra.mxu0 0.0
    %288 = vmatprep.subr.mxu0 0.0
    %289 = vmatpush2.xpose.msra.mxu0 0.0
    %290 = vmatprep.subr.mxu0 0.0
    %291 = vmatpush2.xpose.msra.mxu0 0.0
    %292 = vmatprep.subr.mxu0 0.0
    %293 = vmatpush2.xpose.msra.mxu0 0.0
    %294 = vmatprep.subr.mxu0 0.0
    %295 = vmatpush2.xpose.msra.mxu0 0.0
    %296 = vmatprep.subr.mxu0 0.0
    %297 = vmatpush2.xpose.msra.mxu0 0.0
    %298 = vmatprep.subr.mxu0 0.0
    %299 = vmatpush2.xpose.msra.mxu0 0.0
    %300 = vmatprep.subr.mxu0 0.0
    %301 = vmatpush2.xpose.msra.mxu0 0.0
    %302 = vmatprep.subr.mxu0 0.0
    %303 = vmatpush2.xpose.msra.mxu0 0.0
    %304 = vmatprep.subr.mxu0 0.0
    %305 = vmatpush2.xpose.msra.mxu0 0.0
    %306 = vmatprep.subr.mxu0 0.0
    %307 = vmatpush2.xpose.msra.mxu0 0.0
    %308 = vmatprep.subr.mxu0 0.0
    %309 = vmatpush2.xpose.msra.mxu0 0.0
    %310 = vmatprep.mubr.f32.mxu0 0.0
    %311 = vmatmul.mubr.f32.gmra.mxu0 %v242
    %v312 = vpop.f32.mrf.mxu0
    %v313 = vadd.f32 0.0, %v312
    %v314 = vpop.f32.mrf.mxu0
    %315 = vdwg.mxu0
    %v316 = vsel %vm164, %v236, -inf
    %317 = vmax.xlane.f32.xlu0 %v316
    %v318 = vpop.xlane.xlu0 %317
    %v319 = vsel %vm164, %v313, -inf
    %320 = vmax.xlane.f32.xlu0 %v319
    %v321 = vpop.xlane.xlu0 %320
    %v322 = vsub.f32 %v236, %v318
    %v323 = vsub.f32 %v313, %v321
    %v324 = vmul.f32 %v322, 1.442695
    %v325 = vpow.pop %v324
    %v326 = vmul.f32 %v323, 1.442695
    %v327 = vpow.pop %v326
    %v328 = vsel %vm164, %v325, 0.0
    %329 = vadd.xlane.f32.xlu0 %v328
    %v330 = vpop.xlane.xlu0 %329
    %v331 = vsel %vm164, %v327, 0.0
    %332 = vadd.xlane.f32.xlu0 %v331
    %v333 = vpop.xlane.xlu0 %332
    %v334 = vrcp.pop %v330
    %v335 = vrcp.pop %v333
    %v336 = vmul.f32 %v325, %v334
    %v337 = vmul.f32 %v327, %v335
    %338 = vrot.lane.b32.xlu0 %v149, 64
    %v339 = vpop.permute.xlu0 %338
    %v342 = vsel %vm164, %v336, 0
    %344 = vmatprep.subr.mxu0 0.0
    %345 = vmatpush1.msra.mxu0 0.0
    %346 = vmatprep.subr.mxu0 0.0
    %347 = vmatpush1.msra.mxu0 0.0
    %348 = vmatprep.subr.mxu0 0.0
    %349 = vmatpush1.msra.mxu0 0.0
    %350 = vmatprep.subr.mxu0 0.0
    %351 = vmatpush1.msra.mxu0 0.0
    %352 = vmatprep.subr.mxu0 0.0
    %353 = vmatpush1.msra.mxu0 0.0
    %354 = vmatprep.subr.mxu0 0.0
    %355 = vmatpush1.msra.mxu0 0.0
    %356 = vmatprep.subr.mxu0 0.0
    %357 = vmatpush1.msra.mxu0 0.0
    %358 = vmatprep.subr.mxu0 0.0
    %359 = vmatpush1.msra.mxu0 0.0
    %360 = vmatprep.subr.mxu0 0.0
    %361 = vmatpush1.msra.mxu0 0.0
    %362 = vmatprep.subr.mxu0 0.0
    %363 = vmatpush1.msra.mxu0 0.0
    %364 = vmatprep.subr.mxu0 0.0
    %365 = vmatpush1.msra.mxu0 0.0
    %366 = vmatprep.subr.mxu0 0.0
    %367 = vmatpush1.msra.mxu0 0.0
    %368 = vmatprep.subr.mxu0 0.0
    %369 = vmatpush1.msra.mxu0 0.0
    %370 = vmatprep.subr.mxu0 0.0
    %371 = vmatpush1.msra.mxu0 0.0
    %372 = vmatprep.subr.mxu0 0.0
    %373 = vmatpush1.msra.mxu0 0.0
    %374 = vmatprep.subr.mxu0 0.0
    %375 = vmatpush1.msra.mxu0 %v339
    %376 = vmatprep.subr.mxu0 0.0
    %377 = vmatpush2.msra.mxu0 0.0
    %378 = vmatprep.subr.mxu0 0.0
    %379 = vmatpush2.msra.mxu0 0.0
    %380 = vmatprep.subr.mxu0 0.0
    %381 = vmatpush2.msra.mxu0 0.0
    %382 = vmatprep.subr.mxu0 0.0
    %383 = vmatpush2.msra.mxu0 0.0
    %384 = vmatprep.subr.mxu0 0.0
    %385 = vmatpush2.msra.mxu0 0.0
    %386 = vmatprep.subr.mxu0 0.0
    %387 = vmatpush2.msra.mxu0 0.0
    %388 = vmatprep.subr.mxu0 0.0
    %389 = vmatpush2.msra.mxu0 0.0
    %390 = vmatprep.subr.mxu0 0.0
    %391 = vmatpush2.msra.mxu0 0.0
    %392 = vmatprep.subr.mxu0 0.0
    %393 = vmatpush2.msra.mxu0 0.0
    %394 = vmatprep.subr.mxu0 0.0
    %395 = vmatpush2.msra.mxu0 0.0
    %396 = vmatprep.subr.mxu0 0.0
    %397 = vmatpush2.msra.mxu0 0.0
    %398 = vmatprep.subr.mxu0 0.0
    %399 = vmatpush2.msra.mxu0 0.0
    %400 = vmatprep.subr.mxu0 0.0
    %401 = vmatpush2.msra.mxu0 0.0
    %402 = vmatprep.subr.mxu0 0.0
    %403 = vmatpush2.msra.mxu0 0.0
    %404 = vmatprep.subr.mxu0 0.0
    %405 = vmatpush2.msra.mxu0 0.0
    %406 = vmatprep.subr.mxu0 0.0
    %407 = vmatpush2.msra.mxu0 0.0
    %408 = vmatprep.mubr.f32.mxu0 0.0
    %409 = vmatmul.mubr.f32.gmra.mxu0 %v342
    %v410 = vpop.f32.mrf.mxu0
    %v411 = vadd.f32 0.0, %v410
    %v412 = vpop.f32.mrf.mxu0
    %413 = vdwg.mxu0
    %414 = vrot.lane.b32.xlu0 %v154, 64
    %v415 = vpop.permute.xlu0 %414
    %v418 = vsel %vm164, %v337, 0
    %420 = vmatprep.subr.mxu0 0.0
    %421 = vmatpush1.msra.mxu0 0.0
    %422 = vmatprep.subr.mxu0 0.0
    %423 = vmatpush1.msra.mxu0 0.0
    %424 = vmatprep.subr.mxu0 0.0
    %425 = vmatpush1.msra.mxu0 0.0
    %426 = vmatprep.subr.mxu0 0.0
    %427 = vmatpush1.msra.mxu0 0.0
    %428 = vmatprep.subr.mxu0 0.0
    %429 = vmatpush1.msra.mxu0 0.0
    %430 = vmatprep.subr.mxu0 0.0
    %431 = vmatpush1.msra.mxu0 0.0
    %432 = vmatprep.subr.mxu0 0.0
    %433 = vmatpush1.msra.mxu0 0.0
    %434 = vmatprep.subr.mxu0 0.0
    %435 = vmatpush1.msra.mxu0 0.0
    %436 = vmatprep.subr.mxu0 0.0
    %437 = vmatpush1.msra.mxu0 0.0
    %438 = vmatprep.subr.mxu0 0.0
    %439 = vmatpush1.msra.mxu0 0.0
    %440 = vmatprep.subr.mxu0 0.0
    %441 = vmatpush1.msra.mxu0 0.0
    %442 = vmatprep.subr.mxu0 0.0
    %443 = vmatpush1.msra.mxu0 0.0
    %444 = vmatprep.subr.mxu0 0.0
    %445 = vmatpush1.msra.mxu0 0.0
    %446 = vmatprep.subr.mxu0 0.0
    %447 = vmatpush1.msra.mxu0 0.0
    %448 = vmatprep.subr.mxu0 0.0
    %449 = vmatpush1.msra.mxu0 0.0
    %450 = vmatprep.subr.mxu0 0.0
    %451 = vmatpush1.msra.mxu0 %v415
    %452 = vmatprep.subr.mxu0 0.0
    %453 = vmatpush2.msra.mxu0 0.0
    %454 = vmatprep.subr.mxu0 0.0
    %455 = vmatpush2.msra.mxu0 0.0
    %456 = vmatprep.subr.mxu0 0.0
    %457 = vmatpush2.msra.mxu0 0.0
    %458 = vmatprep.subr.mxu0 0.0
    %459 = vmatpush2.msra.mxu0 0.0
    %460 = vmatprep.subr.mxu0 0.0
    %461 = vmatpush2.msra.mxu0 0.0
    %462 = vmatprep.subr.mxu0 0.0
    %463 = vmatpush2.msra.mxu0 0.0
    %464 = vmatprep.subr.mxu0 0.0
    %465 = vmatpush2.msra.mxu0 0.0
    %466 = vmatprep.subr.mxu0 0.0
    %467 = vmatpush2.msra.mxu0 0.0
    %468 = vmatprep.subr.mxu0 0.0
    %469 = vmatpush2.msra.mxu0 0.0
    %470 = vmatprep.subr.mxu0 0.0
    %471 = vmatpush2.msra.mxu0 0.0
    %472 = vmatprep.subr.mxu0 0.0
    %473 = vmatpush2.msra.mxu0 0.0
    %474 = vmatprep.subr.mxu0 0.0
    %475 = vmatpush2.msra.mxu0 0.0
    %476 = vmatprep.subr.mxu0 0.0
    %477 = vmatpush2.msra.mxu0 0.0
    %478 = vmatprep.subr.mxu0 0.0
    %479 = vmatpush2.msra.mxu0 0.0
    %480 = vmatprep.subr.mxu0 0.0
    %481 = vmatpush2.msra.mxu0 0.0
    %482 = vmatprep.subr.mxu0 0.0
    %483 = vmatpush2.msra.mxu0 0.0
    %484 = vmatprep.mubr.f32.mxu0 0.0
    %485 = vmatmul.mubr.f32.gmra.mxu0 %v418
    %v486 = vpop.f32.mrf.mxu0
    %v487 = vadd.f32 0.0, %v486
    %v488 = vpop.f32.mrf.mxu0
    %489 = vdwg.mxu0
    %490 = vrot.lane.b32.xlu0 %v149, 120
    %v491 = vpop.permute.xlu0 %490
    %492 = vrot.lane.b32.xlu0 %v149, 88
    %v493 = vpop.permute.xlu0 %492
    %v494 = vsel %vm164, %v491, 0
    %v496 = vsel %vm164, %v493, 0
    %498 = vmatprep.subr.mxu0 0.0
    %499 = vmatpush1.xpose.msra.mxu0 0.0
    %500 = vmatprep.subr.mxu0 0.0
    %501 = vmatpush1.xpose.msra.mxu0 0.0
    %502 = vmatprep.subr.mxu0 0.0
    %503 = vmatpush1.xpose.msra.mxu0 0.0
    %504 = vmatprep.subr.mxu0 0.0
    %505 = vmatpush1.xpose.msra.mxu0 0.0
    %506 = vmatprep.subr.mxu0 0.0
    %507 = vmatpush1.xpose.msra.mxu0 0.0
    %508 = vmatprep.subr.mxu0 0.0
    %509 = vmatpush1.xpose.msra.mxu0 0.0
    %510 = vmatprep.subr.mxu0 0.0
    %511 = vmatpush1.xpose.msra.mxu0 0.0
    %512 = vmatprep.subr.mxu0 0.0
    %513 = vmatpush1.xpose.msra.mxu0 0.0
    %514 = vmatprep.subr.mxu0 0.0
    %515 = vmatpush1.xpose.msra.mxu0 0.0
    %516 = vmatprep.subr.mxu0 0.0
    %517 = vmatpush1.xpose.msra.mxu0 0.0
    %518 = vmatprep.subr.mxu0 0.0
    %519 = vmatpush1.xpose.msra.mxu0 0.0
    %520 = vmatprep.subr.mxu0 0.0
    %521 = vmatpush1.xpose.msra.mxu0 0.0
    %522 = vmatprep.subr.mxu0 0.0
    %523 = vmatpush1.xpose.msra.mxu0 0.0
    %524 = vmatprep.subr.mxu0 0.0
    %525 = vmatpush1.xpose.msra.mxu0 0.0
    %526 = vmatprep.subr.mxu0 0.0
    %527 = vmatpush1.xpose.msra.mxu0 0.0
    %528 = vmatprep.subr.mxu0 0.0
    %529 = vmatpush1.xpose.msra.mxu0 %v496
    %530 = vmatprep.subr.mxu0 0.0
    %531 = vmatpush2.xpose.msra.mxu0 0.0
    %532 = vmatprep.subr.mxu0 0.0
    %533 = vmatpush2.xpose.msra.mxu0 0.0
    %534 = vmatprep.subr.mxu0 0.0
    %535 = vmatpush2.xpose.msra.mxu0 0.0
    %536 = vmatprep.subr.mxu0 0.0
    %537 = vmatpush2.xpose.msra.mxu0 0.0
    %538 = vmatprep.subr.mxu0 0.0
    %539 = vmatpush2.xpose.msra.mxu0 0.0
    %540 = vmatprep.subr.mxu0 0.0
    %541 = vmatpush2.xpose.msra.mxu0 0.0
    %542 = vmatprep.subr.mxu0 0.0
    %543 = vmatpush2.xpose.msra.mxu0 0.0
    %544 = vmatprep.subr.mxu0 0.0
    %545 = vmatpush2.xpose.msra.mxu0 0.0
    %546 = vmatprep.subr.mxu0 0.0
    %547 = vmatpush2.xpose.msra.mxu0 0.0
    %548 = vmatprep.subr.mxu0 0.0
    %549 = vmatpush2.xpose.msra.mxu0 0.0
    %550 = vmatprep.subr.mxu0 0.0
    %551 = vmatpush2.xpose.msra.mxu0 0.0
    %552 = vmatprep.subr.mxu0 0.0
    %553 = vmatpush2.xpose.msra.mxu0 0.0
    %554 = vmatprep.subr.mxu0 0.0
    %555 = vmatpush2.xpose.msra.mxu0 0.0
    %556 = vmatprep.subr.mxu0 0.0
    %557 = vmatpush2.xpose.msra.mxu0 0.0
    %558 = vmatprep.subr.mxu0 0.0
    %559 = vmatpush2.xpose.msra.mxu0 0.0
    %560 = vmatprep.subr.mxu0 0.0
    %561 = vmatpush2.xpose.msra.mxu0 0.0
    %562 = vmatprep.mubr.f32.mxu0 0.0
    %563 = vmatmul.mubr.f32.gmra.mxu0 %v494
    %v564 = vpop.f32.mrf.mxu0
    %v565 = vadd.f32 0.0, %v564
    %v566 = vpop.f32.mrf.mxu0
    %567 = vdwg.mxu0
    %568 = vrot.lane.b32.xlu0 %v154, 120
    %v569 = vpop.permute.xlu0 %568
    %570 = vrot.lane.b32.xlu0 %v154, 88
    %v571 = vpop.permute.xlu0 %570
    %v572 = vsel %vm164, %v569, 0
    %v574 = vsel %vm164, %v571, 0
    %576 = vmatprep.subr.mxu0 0.0
    %577 = vmatpush1.xpose.msra.mxu0 0.0
    %578 = vmatprep.subr.mxu0 0.0
    %579 = vmatpush1.xpose.msra.mxu0 0.0
    %580 = vmatprep.subr.mxu0 0.0
    %581 = vmatpush1.xpose.msra.mxu0 0.0
    %582 = vmatprep.subr.mxu0 0.0
    %583 = vmatpush1.xpose.msra.mxu0 0.0
    %584 = vmatprep.subr.mxu0 0.0
    %585 = vmatpush1.xpose.msra.mxu0 0.0
    %586 = vmatprep.subr.mxu0 0.0
    %587 = vmatpush1.xpose.msra.mxu0 0.0
    %588 = vmatprep.subr.mxu0 0.0
    %589 = vmatpush1.xpose.msra.mxu0 0.0
    %590 = vmatprep.subr.mxu0 0.0
    %591 = vmatpush1.xpose.msra.mxu0 0.0
    %592 = vmatprep.subr.mxu0 0.0
    %593 = vmatpush1.xpose.msra.mxu0 0.0
    %594 = vmatprep.subr.mxu0 0.0
    %595 = vmatpush1.xpose.msra.mxu0 0.0
    %596 = vmatprep.subr.mxu0 0.0
    %597 = vmatpush1.xpose.msra.mxu0 0.0
    %598 = vmatprep.subr.mxu0 0.0
    %599 = vmatpush1.xpose.msra.mxu0 0.0
    %600 = vmatprep.subr.mxu0 0.0
    %601 = vmatpush1.xpose.msra.mxu0 0.0
    %602 = vmatprep.subr.mxu0 0.0
    %603 = vmatpush1.xpose.msra.mxu0 0.0
    %604 = vmatprep.subr.mxu0 0.0
    %605 = vmatpush1.xpose.msra.mxu0 0.0
    %606 = vmatprep.subr.mxu0 0.0
    %607 = vmatpush1.xpose.msra.mxu0 %v574
    %608 = vmatprep.subr.mxu0 0.0
    %609 = vmatpush2.xpose.msra.mxu0 0.0
    %610 = vmatprep.subr.mxu0 0.0
    %611 = vmatpush2.xpose.msra.mxu0 0.0
    %612 = vmatprep.subr.mxu0 0.0
    %613 = vmatpush2.xpose.msra.mxu0 0.0
    %614 = vmatprep.subr.mxu0 0.0
    %615 = vmatpush2.xpose.msra.mxu0 0.0
    %616 = vmatprep.subr.mxu0 0.0
    %617 = vmatpush2.xpose.msra.mxu0 0.0
    %618 = vmatprep.subr.mxu0 0.0
    %619 = vmatpush2.xpose.msra.mxu0 0.0
    %620 = vmatprep.subr.mxu0 0.0
    %621 = vmatpush2.xpose.msra.mxu0 0.0
    %622 = vmatprep.subr.mxu0 0.0
    %623 = vmatpush2.xpose.msra.mxu0 0.0
    %624 = vmatprep.subr.mxu0 0.0
    %625 = vmatpush2.xpose.msra.mxu0 0.0
    %626 = vmatprep.subr.mxu0 0.0
    %627 = vmatpush2.xpose.msra.mxu0 0.0
    %628 = vmatprep.subr.mxu0 0.0
    %629 = vmatpush2.xpose.msra.mxu0 0.0
    %630 = vmatprep.subr.mxu0 0.0
    %631 = vmatpush2.xpose.msra.mxu0 0.0
    %632 = vmatprep.subr.mxu0 0.0
    %633 = vmatpush2.xpose.msra.mxu0 0.0
    %634 = vmatprep.subr.mxu0 0.0
    %635 = vmatpush2.xpose.msra.mxu0 0.0
    %636 = vmatprep.subr.mxu0 0.0
    %637 = vmatpush2.xpose.msra.mxu0 0.0
    %638 = vmatprep.subr.mxu0 0.0
    %639 = vmatpush2.xpose.msra.mxu0 0.0
    %640 = vmatprep.mubr.f32.mxu0 0.0
    %641 = vmatmul.mubr.f32.gmra.mxu0 %v572
    %v642 = vpop.f32.mrf.mxu0
    %v643 = vadd.f32 0.0, %v642
    %v644 = vpop.f32.mrf.mxu0
    %645 = vdwg.mxu0
    %v646 = vsel %vm164, %v565, -inf
    %647 = vmax.xlane.f32.xlu0 %v646
    %v648 = vpop.xlane.xlu0 %647
    %v649 = vsel %vm164, %v643, -inf
    %650 = vmax.xlane.f32.xlu0 %v649
    %v651 = vpop.xlane.xlu0 %650
    %v652 = vsub.f32 %v565, %v648
    %v653 = vsub.f32 %v643, %v651
    %v654 = vmul.f32 %v652, 1.442695
    %v655 = vpow.pop %v654
    %v656 = vmul.f32 %v653, 1.442695
    %v657 = vpow.pop %v656
    %v658 = vsel %vm164, %v655, 0.0
    %659 = vadd.xlane.f32.xlu0 %v658
    %v660 = vpop.xlane.xlu0 %659
    %v661 = vsel %vm164, %v657, 0.0
    %662 = vadd.xlane.f32.xlu0 %v661
    %v663 = vpop.xlane.xlu0 %662
    %v664 = vrcp.pop %v660
    %v665 = vrcp.pop %v663
    %v666 = vmul.f32 %v655, %v664
    %v667 = vmul.f32 %v657, %v665
    %668 = vrot.lane.b32.xlu0 %v149, 56
    %v669 = vpop.permute.xlu0 %668
    %v672 = vsel %vm164, %v666, 0
    %674 = vmatprep.subr.mxu0 0.0
    %675 = vmatpush1.msra.mxu0 0.0
    %676 = vmatprep.subr.mxu0 0.0
    %677 = vmatpush1.msra.mxu0 0.0
    %678 = vmatprep.subr.mxu0 0.0
    %679 = vmatpush1.msra.mxu0 0.0
    %680 = vmatprep.subr.mxu0 0.0
    %681 = vmatpush1.msra.mxu0 0.0
    %682 = vmatprep.subr.mxu0 0.0
    %683 = vmatpush1.msra.mxu0 0.0
    %684 = vmatprep.subr.mxu0 0.0
    %685 = vmatpush1.msra.mxu0 0.0
    %686 = vmatprep.subr.mxu0 0.0
    %687 = vmatpush1.msra.mxu0 0.0
    %688 = vmatprep.subr.mxu0 0.0
    %689 = vmatpush1.msra.mxu0 0.0
    %690 = vmatprep.subr.mxu0 0.0
    %691 = vmatpush1.msra.mxu0 0.0
    %692 = vmatprep.subr.mxu0 0.0
    %693 = vmatpush1.msra.mxu0 0.0
    %694 = vmatprep.subr.mxu0 0.0
    %695 = vmatpush1.msra.mxu0 0.0
    %696 = vmatprep.subr.mxu0 0.0
    %697 = vmatpush1.msra.mxu0 0.0
    %698 = vmatprep.subr.mxu0 0.0
    %699 = vmatpush1.msra.mxu0 0.0
    %700 = vmatprep.subr.mxu0 0.0
    %701 = vmatpush1.msra.mxu0 0.0
    %702 = vmatprep.subr.mxu0 0.0
    %703 = vmatpush1.msra.mxu0 0.0
    %704 = vmatprep.subr.mxu0 0.0
    %705 = vmatpush1.msra.mxu0 %v669
    %706 = vmatprep.subr.mxu0 0.0
    %707 = vmatpush2.msra.mxu0 0.0
    %708 = vmatprep.subr.mxu0 0.0
    %709 = vmatpush2.msra.mxu0 0.0
    %710 = vmatprep.subr.mxu0 0.0
    %711 = vmatpush2.msra.mxu0 0.0
    %712 = vmatprep.subr.mxu0 0.0
    %713 = vmatpush2.msra.mxu0 0.0
    %714 = vmatprep.subr.mxu0 0.0
    %715 = vmatpush2.msra.mxu0 0.0
    %716 = vmatprep.subr.mxu0 0.0
    %717 = vmatpush2.msra.mxu0 0.0
    %718 = vmatprep.subr.mxu0 0.0
    %719 = vmatpush2.msra.mxu0 0.0
    %720 = vmatprep.subr.mxu0 0.0
    %721 = vmatpush2.msra.mxu0 0.0
    %722 = vmatprep.subr.mxu0 0.0
    %723 = vmatpush2.msra.mxu0 0.0
    %724 = vmatprep.subr.mxu0 0.0
    %725 = vmatpush2.msra.mxu0 0.0
    %726 = vmatprep.subr.mxu0 0.0
    %727 = vmatpush2.msra.mxu0 0.0
    %728 = vmatprep.subr.mxu0 0.0
    %729 = vmatpush2.msra.mxu0 0.0
    %730 = vmatprep.subr.mxu0 0.0
    %731 = vmatpush2.msra.mxu0 0.0
    %732 = vmatprep.subr.mxu0 0.0
    %733 = vmatpush2.msra.mxu0 0.0
    %734 = vmatprep.subr.mxu0 0.0
    %735 = vmatpush2.msra.mxu0 0.0
    %736 = vmatprep.subr.mxu0 0.0
    %737 = vmatpush2.msra.mxu0 0.0
    %738 = vmatprep.mubr.f32.mxu0 0.0
    %739 = vmatmul.mubr.f32.gmra.mxu0 %v672
    %v740 = vpop.f32.mrf.mxu0
    %v741 = vadd.f32 0.0, %v740
    %v742 = vpop.f32.mrf.mxu0
    %743 = vdwg.mxu0
    %744 = vrot.lane.b32.xlu0 %v154, 56
    %v745 = vpop.permute.xlu0 %744
    %v748 = vsel %vm164, %v667, 0
    %750 = vmatprep.subr.mxu0 0.0
    %751 = vmatpush1.msra.mxu0 0.0
    %752 = vmatprep.subr.mxu0 0.0
    %753 = vmatpush1.msra.mxu0 0.0
    %754 = vmatprep.subr.mxu0 0.0
    %755 = vmatpush1.msra.mxu0 0.0
    %756 = vmatprep.subr.mxu0 0.0
    %757 = vmatpush1.msra.mxu0 0.0
    %758 = vmatprep.subr.mxu0 0.0
    %759 = vmatpush1.msra.mxu0 0.0
    %760 = vmatprep.subr.mxu0 0.0
    %761 = vmatpush1.msra.mxu0 0.0
    %762 = vmatprep.subr.mxu0 0.0
    %763 = vmatpush1.msra.mxu0 0.0
    %764 = vmatprep.subr.mxu0 0.0
    %765 = vmatpush1.msra.mxu0 0.0
    %766 = vmatprep.subr.mxu0 0.0
    %767 = vmatpush1.msra.mxu0 0.0
    %768 = vmatprep.subr.mxu0 0.0
    %769 = vmatpush1.msra.mxu0 0.0
    %770 = vmatprep.subr.mxu0 0.0
    %771 = vmatpush1.msra.mxu0 0.0
    %772 = vmatprep.subr.mxu0 0.0
    %773 = vmatpush1.msra.mxu0 0.0
    %774 = vmatprep.subr.mxu0 0.0
    %775 = vmatpush1.msra.mxu0 0.0
    %776 = vmatprep.subr.mxu0 0.0
    %777 = vmatpush1.msra.mxu0 0.0
    %778 = vmatprep.subr.mxu0 0.0
    %779 = vmatpush1.msra.mxu0 0.0
    %780 = vmatprep.subr.mxu0 0.0
    %781 = vmatpush1.msra.mxu0 %v745
    %782 = vmatprep.subr.mxu0 0.0
    %783 = vmatpush2.msra.mxu0 0.0
    %784 = vmatprep.subr.mxu0 0.0
    %785 = vmatpush2.msra.mxu0 0.0
    %786 = vmatprep.subr.mxu0 0.0
    %787 = vmatpush2.msra.mxu0 0.0
    %788 = vmatprep.subr.mxu0 0.0
    %789 = vmatpush2.msra.mxu0 0.0
    %790 = vmatprep.subr.mxu0 0.0
    %791 = vmatpush2.msra.mxu0 0.0
    %792 = vmatprep.subr.mxu0 0.0
    %793 = vmatpush2.msra.mxu0 0.0
    %794 = vmatprep.subr.mxu0 0.0
    %795 = vmatpush2.msra.mxu0 0.0
    %796 = vmatprep.subr.mxu0 0.0
    %797 = vmatpush2.msra.mxu0 0.0
    %798 = vmatprep.subr.mxu0 0.0
    %799 = vmatpush2.msra.mxu0 0.0
    %800 = vmatprep.subr.mxu0 0.0
    %801 = vmatpush2.msra.mxu0 0.0
    %802 = vmatprep.subr.mxu0 0.0
    %803 = vmatpush2.msra.mxu0 0.0
    %804 = vmatprep.subr.mxu0 0.0
    %805 = vmatpush2.msra.mxu0 0.0
    %806 = vmatprep.subr.mxu0 0.0
    %807 = vmatpush2.msra.mxu0 0.0
    %808 = vmatprep.subr.mxu0 0.0
    %809 = vmatpush2.msra.mxu0 0.0
    %810 = vmatprep.subr.mxu0 0.0
    %811 = vmatpush2.msra.mxu0 0.0
    %812 = vmatprep.subr.mxu0 0.0
    %813 = vmatpush2.msra.mxu0 0.0
    %814 = vmatprep.mubr.f32.mxu0 0.0
    %815 = vmatmul.mubr.f32.gmra.mxu0 %v748
    %v816 = vpop.f32.mrf.mxu0
    %v817 = vadd.f32 0.0, %v816
    %v818 = vpop.f32.mrf.mxu0
    %819 = vdwg.mxu0
    %v821 = vsel %vm164, %v741, 0
    %v824 = vsel %vm164, %v817, 0
    %826 = vmatprep.subr.mxu0 0.0
    %827 = vmatpush1.msra.mxu0 0.0
    %828 = vmatprep.subr.mxu0 0.0
    %829 = vmatpush1.msra.mxu0 0.0
    %830 = vmatprep.subr.mxu0 0.0
    %831 = vmatpush1.msra.mxu0 0.0
    %832 = vmatprep.subr.mxu0 0.0
    %833 = vmatpush1.msra.mxu0 0.0
    %834 = vmatprep.subr.mxu0 0.0
    %835 = vmatpush1.msra.mxu0 0.0
    %836 = vmatprep.subr.mxu0 0.0
    %837 = vmatpush1.msra.mxu0 0.0
    %838 = vmatprep.subr.mxu0 0.0
    %839 = vmatpush1.msra.mxu0 0.0
    %840 = vmatprep.subr.mxu0 0.0
    %841 = vmatpush1.msra.mxu0 0.0
    %842 = vmatprep.subr.mxu0 0.0
    %843 = vmatpush1.msra.mxu0 0.0
    %844 = vmatprep.subr.mxu0 0.0
    %845 = vmatpush1.msra.mxu0 0.0
    %846 = vmatprep.subr.mxu0 0.0
    %847 = vmatpush1.msra.mxu0 0.0
    %848 = vmatprep.subr.mxu0 0.0
    %849 = vmatpush1.msra.mxu0 0.0
    %850 = vmatprep.subr.mxu0 0.0
    %851 = vmatpush1.msra.mxu0 0.0
    %852 = vmatprep.subr.mxu0 0.0
    %853 = vmatpush1.msra.mxu0 0.0
    %854 = vmatprep.subr.mxu0 0.0
    %855 = vmatpush1.msra.mxu0 0.0
    %856 = vmatprep.subr.mxu0 0.0
    %857 = vmatpush1.msra.mxu0 %v158
    %858 = vmatprep.subr.mxu0 0.0
    %859 = vmatpush2.msra.mxu0 0.0
    %860 = vmatprep.subr.mxu0 0.0
    %861 = vmatpush2.msra.mxu0 0.0
    %862 = vmatprep.subr.mxu0 0.0
    %863 = vmatpush2.msra.mxu0 0.0
    %864 = vmatprep.subr.mxu0 0.0
    %865 = vmatpush2.msra.mxu0 0.0
    %866 = vmatprep.subr.mxu0 0.0
    %867 = vmatpush2.msra.mxu0 0.0
    %868 = vmatprep.subr.mxu0 0.0
    %869 = vmatpush2.msra.mxu0 0.0
    %870 = vmatprep.subr.mxu0 0.0
    %871 = vmatpush2.msra.mxu0 0.0
    %872 = vmatprep.subr.mxu0 0.0
    %873 = vmatpush2.msra.mxu0 0.0
    %874 = vmatprep.subr.mxu0 0.0
    %875 = vmatpush2.msra.mxu0 0.0
    %876 = vmatprep.subr.mxu0 0.0
    %877 = vmatpush2.msra.mxu0 0.0
    %878 = vmatprep.subr.mxu0 0.0
    %879 = vmatpush2.msra.mxu0 0.0
    %880 = vmatprep.subr.mxu0 0.0
    %881 = vmatpush2.msra.mxu0 0.0
    %882 = vmatprep.subr.mxu0 0.0
    %883 = vmatpush2.msra.mxu0 0.0
    %884 = vmatprep.subr.mxu0 0.0
    %885 = vmatpush2.msra.mxu0 0.0
    %886 = vmatprep.subr.mxu0 0.0
    %887 = vmatpush2.msra.mxu0 0.0
    %888 = vmatprep.subr.mxu0 0.0
    %889 = vmatpush2.msra.mxu0 0.0
    %890 = vmatprep.mubr.f32.mxu0 0.0
    %891 = vmatmul.mubr.f32.gmra.mxu0 %v821
    %v892 = vpop.f32.mrf.mxu0
    %v893 = vadd.f32 0.0, %v892
    %v894 = vpop.f32.mrf.mxu0
    %895 = vmatprep.mubr.f32.mxu0 0.0
    %896 = vmatmul.mubr.f32.gmra.mxu0 %v824
    %v897 = vpop.f32.mrf.mxu0
    %v898 = vadd.f32 0.0, %v897
    %v899 = vpop.f32.mrf.mxu0
    %900 = vdwg.mxu0
    %v902 = vsel %vm164, %v411, 0
    %v905 = vsel %vm164, %v487, 0
    %907 = vmatprep.subr.mxu0 0.0
    %908 = vmatpush1.msra.mxu0 0.0
    %909 = vmatprep.subr.mxu0 0.0
    %910 = vmatpush1.msra.mxu0 0.0
    %911 = vmatprep.subr.mxu0 0.0
    %912 = vmatpush1.msra.mxu0 0.0
    %913 = vmatprep.subr.mxu0 0.0
    %914 = vmatpush1.msra.mxu0 0.0
    %915 = vmatprep.subr.mxu0 0.0
    %916 = vmatpush1.msra.mxu0 0.0
    %917 = vmatprep.subr.mxu0 0.0
    %918 = vmatpush1.msra.mxu0 0.0
    %919 = vmatprep.subr.mxu0 0.0
    %920 = vmatpush1.msra.mxu0 0.0
    %921 = vmatprep.subr.mxu0 0.0
    %922 = vmatpush1.msra.mxu0 0.0
    %923 = vmatprep.subr.mxu0 0.0
    %924 = vmatpush1.msra.mxu0 0.0
    %925 = vmatprep.subr.mxu0 0.0
    %926 = vmatpush1.msra.mxu0 0.0
    %927 = vmatprep.subr.mxu0 0.0
    %928 = vmatpush1.msra.mxu0 0.0
    %929 = vmatprep.subr.mxu0 0.0
    %930 = vmatpush1.msra.mxu0 0.0
    %931 = vmatprep.subr.mxu0 0.0
    %932 = vmatpush1.msra.mxu0 0.0
    %933 = vmatprep.subr.mxu0 0.0
    %934 = vmatpush1.msra.mxu0 0.0
    %935 = vmatprep.subr.mxu0 0.0
    %936 = vmatpush1.msra.mxu0 0.0
    %937 = vmatprep.subr.mxu0 0.0
    %938 = vmatpush1.msra.mxu0 %v157
    %939 = vmatprep.subr.mxu0 0.0
    %940 = vmatpush2.msra.mxu0 0.0
    %941 = vmatprep.subr.mxu0 0.0
    %942 = vmatpush2.msra.mxu0 0.0
    %943 = vmatprep.subr.mxu0 0.0
    %944 = vmatpush2.msra.mxu0 0.0
    %945 = vmatprep.subr.mxu0 0.0
    %946 = vmatpush2.msra.mxu0 0.0
    %947 = vmatprep.subr.mxu0 0.0
    %948 = vmatpush2.msra.mxu0 0.0
    %949 = vmatprep.subr.mxu0 0.0
    %950 = vmatpush2.msra.mxu0 0.0
    %951 = vmatprep.subr.mxu0 0.0
    %952 = vmatpush2.msra.mxu0 0.0
    %953 = vmatprep.subr.mxu0 0.0
    %954 = vmatpush2.msra.mxu0 0.0
    %955 = vmatprep.subr.mxu0 0.0
    %956 = vmatpush2.msra.mxu0 0.0
    %957 = vmatprep.subr.mxu0 0.0
    %958 = vmatpush2.msra.mxu0 0.0
    %959 = vmatprep.subr.mxu0 0.0
    %960 = vmatpush2.msra.mxu0 0.0
    %961 = vmatprep.subr.mxu0 0.0
    %962 = vmatpush2.msra.mxu0 0.0
    %963 = vmatprep.subr.mxu0 0.0
    %964 = vmatpush2.msra.mxu0 0.0
    %965 = vmatprep.subr.mxu0 0.0
    %966 = vmatpush2.msra.mxu0 0.0
    %967 = vmatprep.subr.mxu0 0.0
    %968 = vmatpush2.msra.mxu0 0.0
    %969 = vmatprep.subr.mxu0 0.0
    %970 = vmatpush2.msra.mxu0 0.0
    %971 = vmatprep.mubr.f32.mxu0 0.0
    %972 = vmatmul.mubr.f32.gmra.mxu0 %v902
    %v973 = vpop.f32.mrf.mxu0
    %v974 = vadd.f32 %v893, %v973
    %v975 = vpop.f32.mrf.mxu0
    %976 = vmatprep.mubr.f32.mxu0 0.0
    %977 = vmatmul.mubr.f32.gmra.mxu0 %v905
    %v978 = vpop.f32.mrf.mxu0
    %v979 = vadd.f32 %v898, %v978
    %v980 = vpop.f32.mrf.mxu0
    %981 = vdwg.mxu0
    %982 = vrot.lane.b32.xlu0 %v149, 112
    %v983 = vpop.permute.xlu0 %982
    %984 = vrot.lane.b32.xlu0 %v149, 80
    %v985 = vpop.permute.xlu0 %984
    %v986 = vsel %vm164, %v983, 0
    %v988 = vsel %vm164, %v985, 0
    %990 = vmatprep.subr.mxu0 0.0
    %991 = vmatpush1.xpose.msra.mxu0 0.0
    %992 = vmatprep.subr.mxu0 0.0
    %993 = vmatpush1.xpose.msra.mxu0 0.0
    %994 = vmatprep.subr.mxu0 0.0
    %995 = vmatpush1.xpose.msra.mxu0 0.0
    %996 = vmatprep.subr.mxu0 0.0
    %997 = vmatpush1.xpose.msra.mxu0 0.0
    %998 = vmatprep.subr.mxu0 0.0
    %999 = vmatpush1.xpose.msra.mxu0 0.0
    %1000 = vmatprep.subr.mxu0 0.0
    %1001 = vmatpush1.xpose.msra.mxu0 0.0
    %1002 = vmatprep.subr.mxu0 0.0
    %1003 = vmatpush1.xpose.msra.mxu0 0.0
    %1004 = vmatprep.subr.mxu0 0.0
    %1005 = vmatpush1.xpose.msra.mxu0 0.0
    %1006 = vmatprep.subr.mxu0 0.0
    %1007 = vmatpush1.xpose.msra.mxu0 0.0
    %1008 = vmatprep.subr.mxu0 0.0
    %1009 = vmatpush1.xpose.msra.mxu0 0.0
    %1010 = vmatprep.subr.mxu0 0.0
    %1011 = vmatpush1.xpose.msra.mxu0 0.0
    %1012 = vmatprep.subr.mxu0 0.0
    %1013 = vmatpush1.xpose.msra.mxu0 0.0
    %1014 = vmatprep.subr.mxu0 0.0
    %1015 = vmatpush1.xpose.msra.mxu0 0.0
    %1016 = vmatprep.subr.mxu0 0.0
    %1017 = vmatpush1.xpose.msra.mxu0 0.0
    %1018 = vmatprep.subr.mxu0 0.0
    %1019 = vmatpush1.xpose.msra.mxu0 0.0
    %1020 = vmatprep.subr.mxu0 0.0
    %1021 = vmatpush1.xpose.msra.mxu0 %v988
    %1022 = vmatprep.subr.mxu0 0.0
    %1023 = vmatpush2.xpose.msra.mxu0 0.0
    %1024 = vmatprep.subr.mxu0 0.0
    %1025 = vmatpush2.xpose.msra.mxu0 0.0
    %1026 = vmatprep.subr.mxu0 0.0
    %1027 = vmatpush2.xpose.msra.mxu0 0.0
    %1028 = vmatprep.subr.mxu0 0.0
    %1029 = vmatpush2.xpose.msra.mxu0 0.0
    %1030 = vmatprep.subr.mxu0 0.0
    %1031 = vmatpush2.xpose.msra.mxu0 0.0
    %1032 = vmatprep.subr.mxu0 0.0
    %1033 = vmatpush2.xpose.msra.mxu0 0.0
    %1034 = vmatprep.subr.mxu0 0.0
    %1035 = vmatpush2.xpose.msra.mxu0 0.0
    %1036 = vmatprep.subr.mxu0 0.0
    %1037 = vmatpush2.xpose.msra.mxu0 0.0
    %1038 = vmatprep.subr.mxu0 0.0
    %1039 = vmatpush2.xpose.msra.mxu0 0.0
    %1040 = vmatprep.subr.mxu0 0.0
    %1041 = vmatpush2.xpose.msra.mxu0 0.0
    %1042 = vmatprep.subr.mxu0 0.0
    %1043 = vmatpush2.xpose.msra.mxu0 0.0
    %1044 = vmatprep.subr.mxu0 0.0
    %1045 = vmatpush2.xpose.msra.mxu0 0.0
    %1046 = vmatprep.subr.mxu0 0.0
    %1047 = vmatpush2.xpose.msra.mxu0 0.0
    %1048 = vmatprep.subr.mxu0 0.0
    %1049 = vmatpush2.xpose.msra.mxu0 0.0
    %1050 = vmatprep.subr.mxu0 0.0
    %1051 = vmatpush2.xpose.msra.mxu0 0.0
    %1052 = vmatprep.subr.mxu0 0.0
    %1053 = vmatpush2.xpose.msra.mxu0 0.0
    %1054 = vmatprep.mubr.f32.mxu0 0.0
    %1055 = vmatmul.mubr.f32.gmra.mxu0 %v986
    %v1056 = vpop.f32.mrf.mxu0
    %v1057 = vadd.f32 0.0, %v1056
    %v1058 = vpop.f32.mrf.mxu0
    %1059 = vdwg.mxu0
    %1060 = vrot.lane.b32.xlu0 %v154, 112
    %v1061 = vpop.permute.xlu0 %1060
    %1062 = vrot.lane.b32.xlu0 %v154, 80
    %v1063 = vpop.permute.xlu0 %1062
    %v1064 = vsel %vm164, %v1061, 0
    %v1066 = vsel %vm164, %v1063, 0
    %1068 = vmatprep.subr.mxu0 0.0
    %1069 = vmatpush1.xpose.msra.mxu0 0.0
    %1070 = vmatprep.subr.mxu0 0.0
    %1071 = vmatpush1.xpose.msra.mxu0 0.0
    %1072 = vmatprep.subr.mxu0 0.0
    %1073 = vmatpush1.xpose.msra.mxu0 0.0
    %1074 = vmatprep.subr.mxu0 0.0
    %1075 = vmatpush1.xpose.msra.mxu0 0.0
    %1076 = vmatprep.subr.mxu0 0.0
    %1077 = vmatpush1.xpose.msra.mxu0 0.0
    %1078 = vmatprep.subr.mxu0 0.0
    %1079 = vmatpush1.xpose.msra.mxu0 0.0
    %1080 = vmatprep.subr.mxu0 0.0
    %1081 = vmatpush1.xpose.msra.mxu0 0.0
    %1082 = vmatprep.subr.mxu0 0.0
    %1083 = vmatpush1.xpose.msra.mxu0 0.0
    %1084 = vmatprep.subr.mxu0 0.0
    %1085 = vmatpush1.xpose.msra.mxu0 0.0
    %1086 = vmatprep.subr.mxu0 0.0
    %1087 = vmatpush1.xpose.msra.mxu0 0.0
    %1088 = vmatprep.subr.mxu0 0.0
    %1089 = vmatpush1.xpose.msra.mxu0 0.0
    %1090 = vmatprep.subr.mxu0 0.0
    %1091 = vmatpush1.xpose.msra.mxu0 0.0
    %1092 = vmatprep.subr.mxu0 0.0
    %1093 = vmatpush1.xpose.msra.mxu0 0.0
    %1094 = vmatprep.subr.mxu0 0.0
    %1095 = vmatpush1.xpose.msra.mxu0 0.0
    %1096 = vmatprep.subr.mxu0 0.0
    %1097 = vmatpush1.xpose.msra.mxu0 0.0
    %1098 = vmatprep.subr.mxu0 0.0
    %1099 = vmatpush1.xpose.msra.mxu0 %v1066
    %1100 = vmatprep.subr.mxu0 0.0
    %1101 = vmatpush2.xpose.msra.mxu0 0.0
    %1102 = vmatprep.subr.mxu0 0.0
    %1103 = vmatpush2.xpose.msra.mxu0 0.0
    %1104 = vmatprep.subr.mxu0 0.0
    %1105 = vmatpush2.xpose.msra.mxu0 0.0
    %1106 = vmatprep.subr.mxu0 0.0
    %1107 = vmatpush2.xpose.msra.mxu0 0.0
    %1108 = vmatprep.subr.mxu0 0.0
    %1109 = vmatpush2.xpose.msra.mxu0 0.0
    %1110 = vmatprep.subr.mxu0 0.0
    %1111 = vmatpush2.xpose.msra.mxu0 0.0
    %1112 = vmatprep.subr.mxu0 0.0
    %1113 = vmatpush2.xpose.msra.mxu0 0.0
    %1114 = vmatprep.subr.mxu0 0.0
    %1115 = vmatpush2.xpose.msra.mxu0 0.0
    %1116 = vmatprep.subr.mxu0 0.0
    %1117 = vmatpush2.xpose.msra.mxu0 0.0
    %1118 = vmatprep.subr.mxu0 0.0
    %1119 = vmatpush2.xpose.msra.mxu0 0.0
    %1120 = vmatprep.subr.mxu0 0.0
    %1121 = vmatpush2.xpose.msra.mxu0 0.0
    %1122 = vmatprep.subr.mxu0 0.0
    %1123 = vmatpush2.xpose.msra.mxu0 0.0
    %1124 = vmatprep.subr.mxu0 0.0
    %1125 = vmatpush2.xpose.msra.mxu0 0.0
    %1126 = vmatprep.subr.mxu0 0.0
    %1127 = vmatpush2.xpose.msra.mxu0 0.0
    %1128 = vmatprep.subr.mxu0 0.0
    %1129 = vmatpush2.xpose.msra.mxu0 0.0
    %1130 = vmatprep.subr.mxu0 0.0
    %1131 = vmatpush2.xpose.msra.mxu0 0.0
    %1132 = vmatprep.mubr.f32.mxu0 0.0
    %1133 = vmatmul.mubr.f32.gmra.mxu0 %v1064
    %v1134 = vpop.f32.mrf.mxu0
    %v1135 = vadd.f32 0.0, %v1134
    %v1136 = vpop.f32.mrf.mxu0
    %1137 = vdwg.mxu0
    %v1138 = vsel %vm164, %v1057, -inf
    %1139 = vmax.xlane.f32.xlu0 %v1138
    %v1140 = vpop.xlane.xlu0 %1139
    %v1141 = vsel %vm164, %v1135, -inf
    %1142 = vmax.xlane.f32.xlu0 %v1141
    %v1143 = vpop.xlane.xlu0 %1142
    %v1144 = vsub.f32 %v1057, %v1140
    %v1145 = vsub.f32 %v1135, %v1143
    %v1146 = vmul.f32 %v1144, 1.442695
    %v1147 = vpow.pop %v1146
    %v1148 = vmul.f32 %v1145, 1.442695
    %v1149 = vpow.pop %v1148
    %v1150 = vsel %vm164, %v1147, 0.0
    %1151 = vadd.xlane.f32.xlu0 %v1150
    %v1152 = vpop.xlane.xlu0 %1151
    %v1153 = vsel %vm164, %v1149, 0.0
    %1154 = vadd.xlane.f32.xlu0 %v1153
    %v1155 = vpop.xlane.xlu0 %1154
    %v1156 = vrcp.pop %v1152
    %v1157 = vrcp.pop %v1155
    %v1158 = vmul.f32 %v1147, %v1156
    %v1159 = vmul.f32 %v1149, %v1157
    %1160 = vrot.lane.b32.xlu0 %v149, 48
    %v1161 = vpop.permute.xlu0 %1160
    %v1164 = vsel %vm164, %v1158, 0
    %1166 = vmatprep.subr.mxu0 0.0
    %1167 = vmatpush1.msra.mxu0 0.0
    %1168 = vmatprep.subr.mxu0 0.0
    %1169 = vmatpush1.msra.mxu0 0.0
    %1170 = vmatprep.subr.mxu0 0.0
    %1171 = vmatpush1.msra.mxu0 0.0
    %1172 = vmatprep.subr.mxu0 0.0
    %1173 = vmatpush1.msra.mxu0 0.0
    %1174 = vmatprep.subr.mxu0 0.0
    %1175 = vmatpush1.msra.mxu0 0.0
    %1176 = vmatprep.subr.mxu0 0.0
    %1177 = vmatpush1.msra.mxu0 0.0
    %1178 = vmatprep.subr.mxu0 0.0
    %1179 = vmatpush1.msra.mxu0 0.0
    %1180 = vmatprep.subr.mxu0 0.0
    %1181 = vmatpush1.msra.mxu0 0.0
    %1182 = vmatprep.subr.mxu0 0.0
    %1183 = vmatpush1.msra.mxu0 0.0
    %1184 = vmatprep.subr.mxu0 0.0
    %1185 = vmatpush1.msra.mxu0 0.0
    %1186 = vmatprep.subr.mxu0 0.0
    %1187 = vmatpush1.msra.mxu0 0.0
    %1188 = vmatprep.subr.mxu0 0.0
    %1189 = vmatpush1.msra.mxu0 0.0
    %1190 = vmatprep.subr.mxu0 0.0
    %1191 = vmatpush1.msra.mxu0 0.0
    %1192 = vmatprep.subr.mxu0 0.0
    %1193 = vmatpush1.msra.mxu0 0.0
    %1194 = vmatprep.subr.mxu0 0.0
    %1195 = vmatpush1.msra.mxu0 0.0
    %1196 = vmatprep.subr.mxu0 0.0
    %1197 = vmatpush1.msra.mxu0 %v1161
    %1198 = vmatprep.subr.mxu0 0.0
    %1199 = vmatpush2.msra.mxu0 0.0
    %1200 = vmatprep.subr.mxu0 0.0
    %1201 = vmatpush2.msra.mxu0 0.0
    %1202 = vmatprep.subr.mxu0 0.0
    %1203 = vmatpush2.msra.mxu0 0.0
    %1204 = vmatprep.subr.mxu0 0.0
    %1205 = vmatpush2.msra.mxu0 0.0
    %1206 = vmatprep.subr.mxu0 0.0
    %1207 = vmatpush2.msra.mxu0 0.0
    %1208 = vmatprep.subr.mxu0 0.0
    %1209 = vmatpush2.msra.mxu0 0.0
    %1210 = vmatprep.subr.mxu0 0.0
    %1211 = vmatpush2.msra.mxu0 0.0
    %1212 = vmatprep.subr.mxu0 0.0
    %1213 = vmatpush2.msra.mxu0 0.0
    %1214 = vmatprep.subr.mxu0 0.0
    %1215 = vmatpush2.msra.mxu0 0.0
    %1216 = vmatprep.subr.mxu0 0.0
    %1217 = vmatpush2.msra.mxu0 0.0
    %1218 = vmatprep.subr.mxu0 0.0
    %1219 = vmatpush2.msra.mxu0 0.0
    %1220 = vmatprep.subr.mxu0 0.0
    %1221 = vmatpush2.msra.mxu0 0.0
    %1222 = vmatprep.subr.mxu0 0.0
    %1223 = vmatpush2.msra.mxu0 0.0
    %1224 = vmatprep.subr.mxu0 0.0
    %1225 = vmatpush2.msra.mxu0 0.0
    %1226 = vmatprep.subr.mxu0 0.0
    %1227 = vmatpush2.msra.mxu0 0.0
    %1228 = vmatprep.subr.mxu0 0.0
    %1229 = vmatpush2.msra.mxu0 0.0
    %1230 = vmatprep.mubr.f32.mxu0 0.0
    %1231 = vmatmul.mubr.f32.gmra.mxu0 %v1164
    %v1232 = vpop.f32.mrf.mxu0
    %v1233 = vadd.f32 0.0, %v1232
    %v1234 = vpop.f32.mrf.mxu0
    %1235 = vdwg.mxu0
    %1236 = vrot.lane.b32.xlu0 %v154, 48
    %v1237 = vpop.permute.xlu0 %1236
    %v1240 = vsel %vm164, %v1159, 0
    %1242 = vmatprep.subr.mxu0 0.0
    %1243 = vmatpush1.msra.mxu0 0.0
    %1244 = vmatprep.subr.mxu0 0.0
    %1245 = vmatpush1.msra.mxu0 0.0
    %1246 = vmatprep.subr.mxu0 0.0
    %1247 = vmatpush1.msra.mxu0 0.0
    %1248 = vmatprep.subr.mxu0 0.0
    %1249 = vmatpush1.msra.mxu0 0.0
    %1250 = vmatprep.subr.mxu0 0.0
    %1251 = vmatpush1.msra.mxu0 0.0
    %1252 = vmatprep.subr.mxu0 0.0
    %1253 = vmatpush1.msra.mxu0 0.0
    %1254 = vmatprep.subr.mxu0 0.0
    %1255 = vmatpush1.msra.mxu0 0.0
    %1256 = vmatprep.subr.mxu0 0.0
    %1257 = vmatpush1.msra.mxu0 0.0
    %1258 = vmatprep.subr.mxu0 0.0
    %1259 = vmatpush1.msra.mxu0 0.0
    %1260 = vmatprep.subr.mxu0 0.0
    %1261 = vmatpush1.msra.mxu0 0.0
    %1262 = vmatprep.subr.mxu0 0.0
    %1263 = vmatpush1.msra.mxu0 0.0
    %1264 = vmatprep.subr.mxu0 0.0
    %1265 = vmatpush1.msra.mxu0 0.0
    %1266 = vmatprep.subr.mxu0 0.0
    %1267 = vmatpush1.msra.mxu0 0.0
    %1268 = vmatprep.subr.mxu0 0.0
    %1269 = vmatpush1.msra.mxu0 0.0
    %1270 = vmatprep.subr.mxu0 0.0
    %1271 = vmatpush1.msra.mxu0 0.0
    %1272 = vmatprep.subr.mxu0 0.0
    %1273 = vmatpush1.msra.mxu0 %v1237
    %1274 = vmatprep.subr.mxu0 0.0
    %1275 = vmatpush2.msra.mxu0 0.0
    %1276 = vmatprep.subr.mxu0 0.0
    %1277 = vmatpush2.msra.mxu0 0.0
    %1278 = vmatprep.subr.mxu0 0.0
    %1279 = vmatpush2.msra.mxu0 0.0
    %1280 = vmatprep.subr.mxu0 0.0
    %1281 = vmatpush2.msra.mxu0 0.0
    %1282 = vmatprep.subr.mxu0 0.0
    %1283 = vmatpush2.msra.mxu0 0.0
    %1284 = vmatprep.subr.mxu0 0.0
    %1285 = vmatpush2.msra.mxu0 0.0
    %1286 = vmatprep.subr.mxu0 0.0
    %1287 = vmatpush2.msra.mxu0 0.0
    %1288 = vmatprep.subr.mxu0 0.0
    %1289 = vmatpush2.msra.mxu0 0.0
    %1290 = vmatprep.subr.mxu0 0.0
    %1291 = vmatpush2.msra.mxu0 0.0
    %1292 = vmatprep.subr.mxu0 0.0
    %1293 = vmatpush2.msra.mxu0 0.0
    %1294 = vmatprep.subr.mxu0 0.0
    %1295 = vmatpush2.msra.mxu0 0.0
    %1296 = vmatprep.subr.mxu0 0.0
    %1297 = vmatpush2.msra.mxu0 0.0
    %1298 = vmatprep.subr.mxu0 0.0
    %1299 = vmatpush2.msra.mxu0 0.0
    %1300 = vmatprep.subr.mxu0 0.0
    %1301 = vmatpush2.msra.mxu0 0.0
    %1302 = vmatprep.subr.mxu0 0.0
    %1303 = vmatpush2.msra.mxu0 0.0
    %1304 = vmatprep.subr.mxu0 0.0
    %1305 = vmatpush2.msra.mxu0 0.0
    %1306 = vmatprep.mubr.f32.mxu0 0.0
    %1307 = vmatmul.mubr.f32.gmra.mxu0 %v1240
    %v1308 = vpop.f32.mrf.mxu0
    %v1309 = vadd.f32 0.0, %v1308
    %v1310 = vpop.f32.mrf.mxu0
    %1311 = vdwg.mxu0
    %v1313 = vsel %vm164, %v1233, 0
    %v1316 = vsel %vm164, %v1309, 0
    %1318 = vmatprep.subr.mxu0 0.0
    %1319 = vmatpush1.msra.mxu0 0.0
    %1320 = vmatprep.subr.mxu0 0.0
    %1321 = vmatpush1.msra.mxu0 0.0
    %1322 = vmatprep.subr.mxu0 0.0
    %1323 = vmatpush1.msra.mxu0 0.0
    %1324 = vmatprep.subr.mxu0 0.0
    %1325 = vmatpush1.msra.mxu0 0.0
    %1326 = vmatprep.subr.mxu0 0.0
    %1327 = vmatpush1.msra.mxu0 0.0
    %1328 = vmatprep.subr.mxu0 0.0
    %1329 = vmatpush1.msra.mxu0 0.0
    %1330 = vmatprep.subr.mxu0 0.0
    %1331 = vmatpush1.msra.mxu0 0.0
    %1332 = vmatprep.subr.mxu0 0.0
    %1333 = vmatpush1.msra.mxu0 0.0
    %1334 = vmatprep.subr.mxu0 0.0
    %1335 = vmatpush1.msra.mxu0 0.0
    %1336 = vmatprep.subr.mxu0 0.0
    %1337 = vmatpush1.msra.mxu0 0.0
    %1338 = vmatprep.subr.mxu0 0.0
    %1339 = vmatpush1.msra.mxu0 0.0
    %1340 = vmatprep.subr.mxu0 0.0
    %1341 = vmatpush1.msra.mxu0 0.0
    %1342 = vmatprep.subr.mxu0 0.0
    %1343 = vmatpush1.msra.mxu0 0.0
    %1344 = vmatprep.subr.mxu0 0.0
    %1345 = vmatpush1.msra.mxu0 0.0
    %1346 = vmatprep.subr.mxu0 0.0
    %1347 = vmatpush1.msra.mxu0 0.0
    %1348 = vmatprep.subr.mxu0 0.0
    %1349 = vmatpush1.msra.mxu0 %v159
    %1350 = vmatprep.subr.mxu0 0.0
    %1351 = vmatpush2.msra.mxu0 0.0
    %1352 = vmatprep.subr.mxu0 0.0
    %1353 = vmatpush2.msra.mxu0 0.0
    %1354 = vmatprep.subr.mxu0 0.0
    %1355 = vmatpush2.msra.mxu0 0.0
    %1356 = vmatprep.subr.mxu0 0.0
    %1357 = vmatpush2.msra.mxu0 0.0
    %1358 = vmatprep.subr.mxu0 0.0
    %1359 = vmatpush2.msra.mxu0 0.0
    %1360 = vmatprep.subr.mxu0 0.0
    %1361 = vmatpush2.msra.mxu0 0.0
    %1362 = vmatprep.subr.mxu0 0.0
    %1363 = vmatpush2.msra.mxu0 0.0
    %1364 = vmatprep.subr.mxu0 0.0
    %1365 = vmatpush2.msra.mxu0 0.0
    %1366 = vmatprep.subr.mxu0 0.0
    %1367 = vmatpush2.msra.mxu0 0.0
    %1368 = vmatprep.subr.mxu0 0.0
    %1369 = vmatpush2.msra.mxu0 0.0
    %1370 = vmatprep.subr.mxu0 0.0
    %1371 = vmatpush2.msra.mxu0 0.0
    %1372 = vmatprep.subr.mxu0 0.0
    %1373 = vmatpush2.msra.mxu0 0.0
    %1374 = vmatprep.subr.mxu0 0.0
    %1375 = vmatpush2.msra.mxu0 0.0
    %1376 = vmatprep.subr.mxu0 0.0
    %1377 = vmatpush2.msra.mxu0 0.0
    %1378 = vmatprep.subr.mxu0 0.0
    %1379 = vmatpush2.msra.mxu0 0.0
    %1380 = vmatprep.subr.mxu0 0.0
    %1381 = vmatpush2.msra.mxu0 0.0
    %1382 = vmatprep.mubr.f32.mxu0 0.0
    %1383 = vmatmul.mubr.f32.gmra.mxu0 %v1313
    %v1384 = vpop.f32.mrf.mxu0
    %v1385 = vadd.f32 0.0, %v1384
    %v1386 = vpop.f32.mrf.mxu0
    %1387 = vmatprep.mubr.f32.mxu0 0.0
    %1388 = vmatmul.mubr.f32.gmra.mxu0 %v1316
    %v1389 = vpop.f32.mrf.mxu0
    %v1390 = vadd.f32 0.0, %v1389
    %v1391 = vpop.f32.mrf.mxu0
    %1392 = vdwg.mxu0
    %v1393 = vadd.f32 %v974, %v1385
    %v1394 = vadd.f32 %v979, %v1390
    %1395 = vrot.lane.b32.xlu0 %v149, 104
    %v1396 = vpop.permute.xlu0 %1395
    %1397 = vrot.lane.b32.xlu0 %v149, 72
    %v1398 = vpop.permute.xlu0 %1397
    %v1399 = vsel %vm164, %v1396, 0
    %v1401 = vsel %vm164, %v1398, 0
    %1403 = vmatprep.subr.mxu0 0.0
    %1404 = vmatpush1.xpose.msra.mxu0 0.0
    %1405 = vmatprep.subr.mxu0 0.0
    %1406 = vmatpush1.xpose.msra.mxu0 0.0
    %1407 = vmatprep.subr.mxu0 0.0
    %1408 = vmatpush1.xpose.msra.mxu0 0.0
    %1409 = vmatprep.subr.mxu0 0.0
    %1410 = vmatpush1.xpose.msra.mxu0 0.0
    %1411 = vmatprep.subr.mxu0 0.0
    %1412 = vmatpush1.xpose.msra.mxu0 0.0
    %1413 = vmatprep.subr.mxu0 0.0
    %1414 = vmatpush1.xpose.msra.mxu0 0.0
    %1415 = vmatprep.subr.mxu0 0.0
    %1416 = vmatpush1.xpose.msra.mxu0 0.0
    %1417 = vmatprep.subr.mxu0 0.0
    %1418 = vmatpush1.xpose.msra.mxu0 0.0
    %1419 = vmatprep.subr.mxu0 0.0
    %1420 = vmatpush1.xpose.msra.mxu0 0.0
    %1421 = vmatprep.subr.mxu0 0.0
    %1422 = vmatpush1.xpose.msra.mxu0 0.0
    %1423 = vmatprep.subr.mxu0 0.0
    %1424 = vmatpush1.xpose.msra.mxu0 0.0
    %1425 = vmatprep.subr.mxu0 0.0
    %1426 = vmatpush1.xpose.msra.mxu0 0.0
    %1427 = vmatprep.subr.mxu0 0.0
    %1428 = vmatpush1.xpose.msra.mxu0 0.0
    %1429 = vmatprep.subr.mxu0 0.0
    %1430 = vmatpush1.xpose.msra.mxu0 0.0
    %1431 = vmatprep.subr.mxu0 0.0
    %1432 = vmatpush1.xpose.msra.mxu0 0.0
    %1433 = vmatprep.subr.mxu0 0.0
    %1434 = vmatpush1.xpose.msra.mxu0 %v1401
    %1435 = vmatprep.subr.mxu0 0.0
    %1436 = vmatpush2.xpose.msra.mxu0 0.0
    %1437 = vmatprep.subr.mxu0 0.0
    %1438 = vmatpush2.xpose.msra.mxu0 0.0
    %1439 = vmatprep.subr.mxu0 0.0
    %1440 = vmatpush2.xpose.msra.mxu0 0.0
    %1441 = vmatprep.subr.mxu0 0.0
    %1442 = vmatpush2.xpose.msra.mxu0 0.0
    %1443 = vmatprep.subr.mxu0 0.0
    %1444 = vmatpush2.xpose.msra.mxu0 0.0
    %1445 = vmatprep.subr.mxu0 0.0
    %1446 = vmatpush2.xpose.msra.mxu0 0.0
    %1447 = vmatprep.subr.mxu0 0.0
    %1448 = vmatpush2.xpose.msra.mxu0 0.0
    %1449 = vmatprep.subr.mxu0 0.0
    %1450 = vmatpush2.xpose.msra.mxu0 0.0
    %1451 = vmatprep.subr.mxu0 0.0
    %1452 = vmatpush2.xpose.msra.mxu0 0.0
    %1453 = vmatprep.subr.mxu0 0.0
    %1454 = vmatpush2.xpose.msra.mxu0 0.0
    %1455 = vmatprep.subr.mxu0 0.0
    %1456 = vmatpush2.xpose.msra.mxu0 0.0
    %1457 = vmatprep.subr.mxu0 0.0
    %1458 = vmatpush2.xpose.msra.mxu0 0.0
    %1459 = vmatprep.subr.mxu0 0.0
    %1460 = vmatpush2.xpose.msra.mxu0 0.0
    %1461 = vmatprep.subr.mxu0 0.0
    %1462 = vmatpush2.xpose.msra.mxu0 0.0
    %1463 = vmatprep.subr.mxu0 0.0
    %1464 = vmatpush2.xpose.msra.mxu0 0.0
    %1465 = vmatprep.subr.mxu0 0.0
    %1466 = vmatpush2.xpose.msra.mxu0 0.0
    %1467 = vmatprep.mubr.f32.mxu0 0.0
    %1468 = vmatmul.mubr.f32.gmra.mxu0 %v1399
    %v1469 = vpop.f32.mrf.mxu0
    %v1470 = vadd.f32 0.0, %v1469
    %v1471 = vpop.f32.mrf.mxu0
    %1472 = vdwg.mxu0
    %1473 = vrot.lane.b32.xlu0 %v154, 104
    %v1474 = vpop.permute.xlu0 %1473
    %1475 = vrot.lane.b32.xlu0 %v154, 72
    %v1476 = vpop.permute.xlu0 %1475
    %v1477 = vsel %vm164, %v1474, 0
    %v1479 = vsel %vm164, %v1476, 0
    %1481 = vmatprep.subr.mxu0 0.0
    %1482 = vmatpush1.xpose.msra.mxu0 0.0
    %1483 = vmatprep.subr.mxu0 0.0
    %1484 = vmatpush1.xpose.msra.mxu0 0.0
    %1485 = vmatprep.subr.mxu0 0.0
    %1486 = vmatpush1.xpose.msra.mxu0 0.0
    %1487 = vmatprep.subr.mxu0 0.0
    %1488 = vmatpush1.xpose.msra.mxu0 0.0
    %1489 = vmatprep.subr.mxu0 0.0
    %1490 = vmatpush1.xpose.msra.mxu0 0.0
    %1491 = vmatprep.subr.mxu0 0.0
    %1492 = vmatpush1.xpose.msra.mxu0 0.0
    %1493 = vmatprep.subr.mxu0 0.0
    %1494 = vmatpush1.xpose.msra.mxu0 0.0
    %1495 = vmatprep.subr.mxu0 0.0
    %1496 = vmatpush1.xpose.msra.mxu0 0.0
    %1497 = vmatprep.subr.mxu0 0.0
    %1498 = vmatpush1.xpose.msra.mxu0 0.0
    %1499 = vmatprep.subr.mxu0 0.0
    %1500 = vmatpush1.xpose.msra.mxu0 0.0
    %1501 = vmatprep.subr.mxu0 0.0
    %1502 = vmatpush1.xpose.msra.mxu0 0.0
    %1503 = vmatprep.subr.mxu0 0.0
    %1504 = vmatpush1.xpose.msra.mxu0 0.0
    %1505 = vmatprep.subr.mxu0 0.0
    %1506 = vmatpush1.xpose.msra.mxu0 0.0
    %1507 = vmatprep.subr.mxu0 0.0
    %1508 = vmatpush1.xpose.msra.mxu0 0.0
    %1509 = vmatprep.subr.mxu0 0.0
    %1510 = vmatpush1.xpose.msra.mxu0 0.0
    %1511 = vmatprep.subr.mxu0 0.0
    %1512 = vmatpush1.xpose.msra.mxu0 %v1479
    %1513 = vmatprep.subr.mxu0 0.0
    %1514 = vmatpush2.xpose.msra.mxu0 0.0
    %1515 = vmatprep.subr.mxu0 0.0
    %1516 = vmatpush2.xpose.msra.mxu0 0.0
    %1517 = vmatprep.subr.mxu0 0.0
    %1518 = vmatpush2.xpose.msra.mxu0 0.0
    %1519 = vmatprep.subr.mxu0 0.0
    %1520 = vmatpush2.xpose.msra.mxu0 0.0
    %1521 = vmatprep.subr.mxu0 0.0
    %1522 = vmatpush2.xpose.msra.mxu0 0.0
    %1523 = vmatprep.subr.mxu0 0.0
    %1524 = vmatpush2.xpose.msra.mxu0 0.0
    %1525 = vmatprep.subr.mxu0 0.0
    %1526 = vmatpush2.xpose.msra.mxu0 0.0
    %1527 = vmatprep.subr.mxu0 0.0
    %1528 = vmatpush2.xpose.msra.mxu0 0.0
    %1529 = vmatprep.subr.mxu0 0.0
    %1530 = vmatpush2.xpose.msra.mxu0 0.0
    %1531 = vmatprep.subr.mxu0 0.0
    %1532 = vmatpush2.xpose.msra.mxu0 0.0
    %1533 = vmatprep.subr.mxu0 0.0
    %1534 = vmatpush2.xpose.msra.mxu0 0.0
    %1535 = vmatprep.subr.mxu0 0.0
    %1536 = vmatpush2.xpose.msra.mxu0 0.0
    %1537 = vmatprep.subr.mxu0 0.0
    %1538 = vmatpush2.xpose.msra.mxu0 0.0
    %1539 = vmatprep.subr.mxu0 0.0
    %1540 = vmatpush2.xpose.msra.mxu0 0.0
    %1541 = vmatprep.subr.mxu0 0.0
    %1542 = vmatpush2.xpose.msra.mxu0 0.0
    %1543 = vmatprep.subr.mxu0 0.0
    %1544 = vmatpush2.xpose.msra.mxu0 0.0
    %1545 = vmatprep.mubr.f32.mxu0 0.0
    %1546 = vmatmul.mubr.f32.gmra.mxu0 %v1477
    %v1547 = vpop.f32.mrf.mxu0
    %v1548 = vadd.f32 0.0, %v1547
    %v1549 = vpop.f32.mrf.mxu0
    %1550 = vdwg.mxu0
    %v1551 = vsel %vm164, %v1470, -inf
    %1552 = vmax.xlane.f32.xlu0 %v1551
    %v1553 = vpop.xlane.xlu0 %1552
    %v1554 = vsel %vm164, %v1548, -inf
    %1555 = vmax.xlane.f32.xlu0 %v1554
    %v1556 = vpop.xlane.xlu0 %1555
    %v1557 = vsub.f32 %v1470, %v1553
    %v1558 = vsub.f32 %v1548, %v1556
    %v1559 = vmul.f32 %v1557, 1.442695
    %v1560 = vpow.pop %v1559
    %v1561 = vmul.f32 %v1558, 1.442695
    %v1562 = vpow.pop %v1561
    %v1563 = vsel %vm164, %v1560, 0.0
    %1564 = vadd.xlane.f32.xlu0 %v1563
    %v1565 = vpop.xlane.xlu0 %1564
    %v1566 = vsel %vm164, %v1562, 0.0
    %1567 = vadd.xlane.f32.xlu0 %v1566
    %v1568 = vpop.xlane.xlu0 %1567
    %v1569 = vrcp.pop %v1565
    %v1570 = vrcp.pop %v1568
    %v1571 = vmul.f32 %v1560, %v1569
    %v1572 = vmul.f32 %v1562, %v1570
    %1573 = vrot.lane.b32.xlu0 %v149, 40
    %v1574 = vpop.permute.xlu0 %1573
    %v1577 = vsel %vm164, %v1571, 0
    %1579 = vmatprep.subr.mxu0 0.0
    %1580 = vmatpush1.msra.mxu0 0.0
    %1581 = vmatprep.subr.mxu0 0.0
    %1582 = vmatpush1.msra.mxu0 0.0
    %1583 = vmatprep.subr.mxu0 0.0
    %1584 = vmatpush1.msra.mxu0 0.0
    %1585 = vmatprep.subr.mxu0 0.0
    %1586 = vmatpush1.msra.mxu0 0.0
    %1587 = vmatprep.subr.mxu0 0.0
    %1588 = vmatpush1.msra.mxu0 0.0
    %1589 = vmatprep.subr.mxu0 0.0
    %1590 = vmatpush1.msra.mxu0 0.0
    %1591 = vmatprep.subr.mxu0 0.0
    %1592 = vmatpush1.msra.mxu0 0.0
    %1593 = vmatprep.subr.mxu0 0.0
    %1594 = vmatpush1.msra.mxu0 0.0
    %1595 = vmatprep.subr.mxu0 0.0
    %1596 = vmatpush1.msra.mxu0 0.0
    %1597 = vmatprep.subr.mxu0 0.0
    %1598 = vmatpush1.msra.mxu0 0.0
    %1599 = vmatprep.subr.mxu0 0.0
    %1600 = vmatpush1.msra.mxu0 0.0
    %1601 = vmatprep.subr.mxu0 0.0
    %1602 = vmatpush1.msra.mxu0 0.0
    %1603 = vmatprep.subr.mxu0 0.0
    %1604 = vmatpush1.msra.mxu0 0.0
    %1605 = vmatprep.subr.mxu0 0.0
    %1606 = vmatpush1.msra.mxu0 0.0
    %1607 = vmatprep.subr.mxu0 0.0
    %1608 = vmatpush1.msra.mxu0 0.0
    %1609 = vmatprep.subr.mxu0 0.0
    %1610 = vmatpush1.msra.mxu0 %v1574
    %1611 = vmatprep.subr.mxu0 0.0
    %1612 = vmatpush2.msra.mxu0 0.0
    %1613 = vmatprep.subr.mxu0 0.0
    %1614 = vmatpush2.msra.mxu0 0.0
    %1615 = vmatprep.subr.mxu0 0.0
    %1616 = vmatpush2.msra.mxu0 0.0
    %1617 = vmatprep.subr.mxu0 0.0
    %1618 = vmatpush2.msra.mxu0 0.0
    %1619 = vmatprep.subr.mxu0 0.0
    %1620 = vmatpush2.msra.mxu0 0.0
    %1621 = vmatprep.subr.mxu0 0.0
    %1622 = vmatpush2.msra.mxu0 0.0
    %1623 = vmatprep.subr.mxu0 0.0
    %1624 = vmatpush2.msra.mxu0 0.0
    %1625 = vmatprep.subr.mxu0 0.0
    %1626 = vmatpush2.msra.mxu0 0.0
    %1627 = vmatprep.subr.mxu0 0.0
    %1628 = vmatpush2.msra.mxu0 0.0
    %1629 = vmatprep.subr.mxu0 0.0
    %1630 = vmatpush2.msra.mxu0 0.0
    %1631 = vmatprep.subr.mxu0 0.0
    %1632 = vmatpush2.msra.mxu0 0.0
    %1633 = vmatprep.subr.mxu0 0.0
    %1634 = vmatpush2.msra.mxu0 0.0
    %1635 = vmatprep.subr.mxu0 0.0
    %1636 = vmatpush2.msra.mxu0 0.0
    %1637 = vmatprep.subr.mxu0 0.0
    %1638 = vmatpush2.msra.mxu0 0.0
    %1639 = vmatprep.subr.mxu0 0.0
    %1640 = vmatpush2.msra.mxu0 0.0
    %1641 = vmatprep.subr.mxu0 0.0
    %1642 = vmatpush2.msra.mxu0 0.0
    %1643 = vmatprep.mubr.f32.mxu0 0.0
    %1644 = vmatmul.mubr.f32.gmra.mxu0 %v1577
    %v1645 = vpop.f32.mrf.mxu0
    %v1646 = vadd.f32 0.0, %v1645
    %v1647 = vpop.f32.mrf.mxu0
    %1648 = vdwg.mxu0
    %1649 = vrot.lane.b32.xlu0 %v154, 40
    %v1650 = vpop.permute.xlu0 %1649
    %v1653 = vsel %vm164, %v1572, 0
    %1655 = vmatprep.subr.mxu0 0.0
    %1656 = vmatpush1.msra.mxu0 0.0
    %1657 = vmatprep.subr.mxu0 0.0
    %1658 = vmatpush1.msra.mxu0 0.0
    %1659 = vmatprep.subr.mxu0 0.0
    %1660 = vmatpush1.msra.mxu0 0.0
    %1661 = vmatprep.subr.mxu0 0.0
    %1662 = vmatpush1.msra.mxu0 0.0
    %1663 = vmatprep.subr.mxu0 0.0
    %1664 = vmatpush1.msra.mxu0 0.0
    %1665 = vmatprep.subr.mxu0 0.0
    %1666 = vmatpush1.msra.mxu0 0.0
    %1667 = vmatprep.subr.mxu0 0.0
    %1668 = vmatpush1.msra.mxu0 0.0
    %1669 = vmatprep.subr.mxu0 0.0
    %1670 = vmatpush1.msra.mxu0 0.0
    %1671 = vmatprep.subr.mxu0 0.0
    %1672 = vmatpush1.msra.mxu0 0.0
    %1673 = vmatprep.subr.mxu0 0.0
    %1674 = vmatpush1.msra.mxu0 0.0
    %1675 = vmatprep.subr.mxu0 0.0
    %1676 = vmatpush1.msra.mxu0 0.0
    %1677 = vmatprep.subr.mxu0 0.0
    %1678 = vmatpush1.msra.mxu0 0.0
    %1679 = vmatprep.subr.mxu0 0.0
    %1680 = vmatpush1.msra.mxu0 0.0
    %1681 = vmatprep.subr.mxu0 0.0
    %1682 = vmatpush1.msra.mxu0 0.0
    %1683 = vmatprep.subr.mxu0 0.0
    %1684 = vmatpush1.msra.mxu0 0.0
    %1685 = vmatprep.subr.mxu0 0.0
    %1686 = vmatpush1.msra.mxu0 %v1650
    %1687 = vmatprep.subr.mxu0 0.0
    %1688 = vmatpush2.msra.mxu0 0.0
    %1689 = vmatprep.subr.mxu0 0.0
    %1690 = vmatpush2.msra.mxu0 0.0
    %1691 = vmatprep.subr.mxu0 0.0
    %1692 = vmatpush2.msra.mxu0 0.0
    %1693 = vmatprep.subr.mxu0 0.0
    %1694 = vmatpush2.msra.mxu0 0.0
    %1695 = vmatprep.subr.mxu0 0.0
    %1696 = vmatpush2.msra.mxu0 0.0
    %1697 = vmatprep.subr.mxu0 0.0
    %1698 = vmatpush2.msra.mxu0 0.0
    %1699 = vmatprep.subr.mxu0 0.0
    %1700 = vmatpush2.msra.mxu0 0.0
    %1701 = vmatprep.subr.mxu0 0.0
    %1702 = vmatpush2.msra.mxu0 0.0
    %1703 = vmatprep.subr.mxu0 0.0
    %1704 = vmatpush2.msra.mxu0 0.0
    %1705 = vmatprep.subr.mxu0 0.0
    %1706 = vmatpush2.msra.mxu0 0.0
    %1707 = vmatprep.subr.mxu0 0.0
    %1708 = vmatpush2.msra.mxu0 0.0
    %1709 = vmatprep.subr.mxu0 0.0
    %1710 = vmatpush2.msra.mxu0 0.0
    %1711 = vmatprep.subr.mxu0 0.0
    %1712 = vmatpush2.msra.mxu0 0.0
    %1713 = vmatprep.subr.mxu0 0.0
    %1714 = vmatpush2.msra.mxu0 0.0
    %1715 = vmatprep.subr.mxu0 0.0
    %1716 = vmatpush2.msra.mxu0 0.0
    %1717 = vmatprep.subr.mxu0 0.0
    %1718 = vmatpush2.msra.mxu0 0.0
    %1719 = vmatprep.mubr.f32.mxu0 0.0
    %1720 = vmatmul.mubr.f32.gmra.mxu0 %v1653
    %v1721 = vpop.f32.mrf.mxu0
    %v1722 = vadd.f32 0.0, %v1721
    %v1723 = vpop.f32.mrf.mxu0
    %1724 = vdwg.mxu0
    %v1726 = vsel %vm164, %v1646, 0
    %v1729 = vsel %vm164, %v1722, 0
    %1731 = vmatprep.subr.mxu0 0.0
    %1732 = vmatpush1.msra.mxu0 0.0
    %1733 = vmatprep.subr.mxu0 0.0
    %1734 = vmatpush1.msra.mxu0 0.0
    %1735 = vmatprep.subr.mxu0 0.0
    %1736 = vmatpush1.msra.mxu0 0.0
    %1737 = vmatprep.subr.mxu0 0.0
    %1738 = vmatpush1.msra.mxu0 0.0
    %1739 = vmatprep.subr.mxu0 0.0
    %1740 = vmatpush1.msra.mxu0 0.0
    %1741 = vmatprep.subr.mxu0 0.0
    %1742 = vmatpush1.msra.mxu0 0.0
    %1743 = vmatprep.subr.mxu0 0.0
    %1744 = vmatpush1.msra.mxu0 0.0
    %1745 = vmatprep.subr.mxu0 0.0
    %1746 = vmatpush1.msra.mxu0 0.0
    %1747 = vmatprep.subr.mxu0 0.0
    %1748 = vmatpush1.msra.mxu0 0.0
    %1749 = vmatprep.subr.mxu0 0.0
    %1750 = vmatpush1.msra.mxu0 0.0
    %1751 = vmatprep.subr.mxu0 0.0
    %1752 = vmatpush1.msra.mxu0 0.0
    %1753 = vmatprep.subr.mxu0 0.0
    %1754 = vmatpush1.msra.mxu0 0.0
    %1755 = vmatprep.subr.mxu0 0.0
    %1756 = vmatpush1.msra.mxu0 0.0
    %1757 = vmatprep.subr.mxu0 0.0
    %1758 = vmatpush1.msra.mxu0 0.0
    %1759 = vmatprep.subr.mxu0 0.0
    %1760 = vmatpush1.msra.mxu0 0.0
    %1761 = vmatprep.subr.mxu0 0.0
    %1762 = vmatpush1.msra.mxu0 %v160
    %1763 = vmatprep.subr.mxu0 0.0
    %1764 = vmatpush2.msra.mxu0 0.0
    %1765 = vmatprep.subr.mxu0 0.0
    %1766 = vmatpush2.msra.mxu0 0.0
    %1767 = vmatprep.subr.mxu0 0.0
    %1768 = vmatpush2.msra.mxu0 0.0
    %1769 = vmatprep.subr.mxu0 0.0
    %1770 = vmatpush2.msra.mxu0 0.0
    %1771 = vmatprep.subr.mxu0 0.0
    %1772 = vmatpush2.msra.mxu0 0.0
    %1773 = vmatprep.subr.mxu0 0.0
    %1774 = vmatpush2.msra.mxu0 0.0
    %1775 = vmatprep.subr.mxu0 0.0
    %1776 = vmatpush2.msra.mxu0 0.0
    %1777 = vmatprep.subr.mxu0 0.0
    %1778 = vmatpush2.msra.mxu0 0.0
    %1779 = vmatprep.subr.mxu0 0.0
    %1780 = vmatpush2.msra.mxu0 0.0
    %1781 = vmatprep.subr.mxu0 0.0
    %1782 = vmatpush2.msra.mxu0 0.0
    %1783 = vmatprep.subr.mxu0 0.0
    %1784 = vmatpush2.msra.mxu0 0.0
    %1785 = vmatprep.subr.mxu0 0.0
    %1786 = vmatpush2.msra.mxu0 0.0
    %1787 = vmatprep.subr.mxu0 0.0
    %1788 = vmatpush2.msra.mxu0 0.0
    %1789 = vmatprep.subr.mxu0 0.0
    %1790 = vmatpush2.msra.mxu0 0.0
    %1791 = vmatprep.subr.mxu0 0.0
    %1792 = vmatpush2.msra.mxu0 0.0
    %1793 = vmatprep.subr.mxu0 0.0
    %1794 = vmatpush2.msra.mxu0 0.0
    %1795 = vmatprep.mubr.f32.mxu0 0.0
    %1796 = vmatmul.mubr.f32.gmra.mxu0 %v1726
    %v1797 = vpop.f32.mrf.mxu0
    %v1798 = vadd.f32 0.0, %v1797
    %v1799 = vpop.f32.mrf.mxu0
    %1800 = vmatprep.mubr.f32.mxu0 0.0
    %1801 = vmatmul.mubr.f32.gmra.mxu0 %v1729
    %v1802 = vpop.f32.mrf.mxu0
    %v1803 = vadd.f32 0.0, %v1802
    %v1804 = vpop.f32.mrf.mxu0
    %1805 = vdwg.mxu0
    %v1806 = vadd.f32 %v1393, %v1798
    %v1807 = vadd.f32 %v1394, %v1803
    %v1808 = vld [vmem:[%s4] sm:$0x1]
    %v1810 = vlaneseq
    %v1811 = vshrl.u32 %v1810, 7
    %v1812 = vsub.s32 0, %v1811
    %v1813 = vrot.slane %v1808, %v1812
    %v1815 = vadd.f32 %v1806, %v1813
    %v1816 = vadd.f32 %v1807, %v1813
    %1817 = vst.msk [vmem:[#allocation8] sm:$0xff] %vm75, %v1815
    %1818 = vst.msk [vmem:[#allocation8 + $0x8] sm:$0xff] %vm75, %v1816
    // Predicated region
    $region34: #{tpu_custom_call.1} parent=1 // pred_check
      _
    $region35: #{tpu_custom_call.1} parent=1 // pred_check_branch
      %1820 = sbr.rel (0) target = $region37
    $region36: #{tpu_custom_call.1} parent=1 // pred_region
      %s1822 = ssub.s32 256, 256
      %1823 = vsyncadd [#allocation4], %s1822
      %s1824 = sshll.u32 [#allocation8], 4
      %s1825 = int_to_ptr.vmem [resolvable:$true] %s1824
      %1830 = dma.vmem_to_hbm [thread:$0]  %s1825, 256, %s5, [#allocation4], 128, 128, 8
    $region37: #{tpu_custom_call.1} parent=1 // pred_fallthru
      _
    // Predicated region
    $region38: #{tpu_custom_call.1} parent=1 // pred_check
      _
    $region39: #{tpu_custom_call.1} parent=1 // pred_check_branch
      %1832 = sbr.rel (0) target = $region41
    $region40: #{tpu_custom_call.1} parent=1 // pred_region
      %1833 = dma.done [#allocation4], 256
    $region41: #{tpu_custom_call.1} parent=1 // pred_fallthru
      _
    %1834 = vsyncpa [#allocation3], 1
    %1835 = vsyncpa [#allocation6], 1
    %1836 = vsyncpa [#allocation4], 1

</llo_original>
